<compile_context>
chip_gen: v7x
topology: tpu7x:2x2x1
jax: 0.10.0
libtpu: 0.0.40
codegen_flags: <defaults>
</compile_context>

<pallas_src>
import jax
import jax.numpy as jnp
from jax.experimental import pallas as pl
from jax.experimental.pallas import tpu as pltpu

EPS = 1e-3  # both BatchNorm2d layers use eps=0.001


def _fused_kernel(x88_ref, x103_ref, g1_ref, b1_ref, w_ref, g2_ref, b2_ref, out_ref):
    """BN(x88) -> add x103 -> 1x1 conv -> BN, fully fused.

    x88_ref, x103_ref : (Cin, M)    activations, M = N*H*W on lanes
    g1/b1             : (Cin, 1)    BN1 affine params
    w_ref             : (Cout, Cin) 1x1 conv weight (OIHW with HW squeezed; no transpose)
    g2/b2             : (Cout, 1)   BN2 affine params
    out_ref           : (Cout, M)

    Training-mode BatchNorm semantics (batch mean / biased batch variance over
    the N,H,W positions per channel), matching a freshly-constructed torch module.
    """
    x88 = x88_ref[...]                                           # (Cin, M)
    x103 = x103_ref[...]
    inv_m = 1.0 / float(x88.shape[-1])

    # --- BN1: one-pass moments (lane reductions), folded into scale/shift ---
    m1 = jnp.sum(x88, axis=-1, keepdims=True) * inv_m            # mean    (Cin,1)
    q1 = jnp.sum(x88 * x88, axis=-1, keepdims=True) * inv_m      # E[x^2]
    v1 = q1 - m1 * m1                                            # biased var
    scale1 = g1_ref[...] * jax.lax.rsqrt(v1 + EPS)
    shift1 = b1_ref[...] - m1 * scale1

    # --- BN1 apply + residual add: one mul + two adds per element ---
    z = x103 + x88 * scale1 + shift1                             # (Cin, M)

    # --- 1x1 conv == (Cout,Cin)x(Cin,M) MXU matmul, bf16 in / f32 accumulate ---
    w = w_ref[...]
    c = jnp.dot(w.astype(jnp.bfloat16), z.astype(jnp.bfloat16),
                preferred_element_type=jnp.float32)              # (Cout, M)

    # --- BN2: mean analytically (E[c] = W @ E[z]); only E[c^2] needs the big reduce ---
    mean_z = jnp.sum(z, axis=-1, keepdims=True) * inv_m          # (Cin, 1)
    m2 = jnp.dot(w, mean_z, preferred_element_type=jnp.float32)  # (Cout, 1)
    q2 = jnp.sum(c * c, axis=-1, keepdims=True) * inv_m          # E[c^2]
    v2 = q2 - m2 * m2
    scale2 = g2_ref[...] * jax.lax.rsqrt(v2 + EPS)
    shift2 = b2_ref[...] - m2 * scale2
    out_ref[...] = c * scale2 + shift2


def fused_bn_add_conv_bn(x88_nchw, x103_nchw, gamma1, beta1, conv_w_oihw, gamma2, beta2):
    """Wrapper. x88/x103: (N, Cin, H, W); conv_w_oihw: (Cout, Cin, 1, 1)."""
    N, Cin, H, W = x88_nchw.shape
    Cout = conv_w_oihw.shape[0]
    M = N * H * W

    # NCHW -> (C, N*H*W). For N == 1 (the module's case) this is a zero-cost
    # reshape; otherwise a single transpose bringing channels to the front.
    def to_cm(x):
        ch = x.shape[1]
        if N == 1:
            return x.reshape(ch, M)
        return jnp.transpose(x, (1, 0, 2, 3)).reshape(ch, M)

    x88_cm = to_cm(x88_nchw).astype(jnp.float32)
    x103_cm = to_cm(x103_nchw).astype(jnp.float32)
    w_2d = conv_w_oihw.reshape(Cout, Cin).astype(jnp.float32)    # 1x1 kernel; free reshape

    g1 = gamma1.reshape(Cin, 1).astype(jnp.float32)
    b1 = beta1.reshape(Cin, 1).astype(jnp.float32)
    g2 = gamma2.reshape(Cout, 1).astype(jnp.float32)
    b2 = beta2.reshape(Cout, 1).astype(jnp.float32)

    vmem = pl.BlockSpec(memory_space=pltpu.MemorySpace.VMEM)
    # TODO(synk): if N*H*W grows large (v7x has only 64 MiB VMEM), switch to a
    # two-pass gridded design over M (accumulate sum/sum-sq per channel, then a
    # second normalize pass) with double-buffered BlockSpecs + dimension_semantics.
    out_cm = pl.pallas_call(
        _fused_kernel,
        out_shape=jax.ShapeDtypeStruct((Cout, M), jnp.float32),
        in_specs=[vmem] * 7,
        out_specs=vmem,
    )(x88_cm, x103_cm, g1, b1, w_2d, g2, b2)

    # (Cout, N*H*W) -> NCHW (free reshape when N == 1).
    if N == 1:
        return out_cm.reshape(1, Cout, H, W)
    return out_cm.reshape(Cout, N, H, W).transpose(1, 0, 2, 3)


def _reference(x88, x103, gamma1, beta1, conv_w, gamma2, beta2):
    """Pure-JAX reference (same math, NCHW) for a sanity check."""
    def bn(x, g, b):
        m = jnp.mean(x, axis=(0, 2, 3), keepdims=True)
        v = jnp.mean((x - m) ** 2, axis=(0, 2, 3), keepdims=True)
        return (x - m) * jax.lax.rsqrt(v + EPS) * g.reshape(1, -1, 1, 1) + b.reshape(1, -1, 1, 1)

    y = bn(x88, gamma1, beta1)
    z = x103 + y
    c = jax.lax.conv_general_dilated(z, conv_w, (1, 1), "VALID",
                                     dimension_numbers=("NCHW", "OIHW", "NCHW"))
    return bn(c, gamma2, beta2)


if __name__ == "__main__":
    key = jax.random.PRNGKey(0)
    k1, k2, k3, k4, k5, k6, k7 = jax.random.split(key, 7)

    N, Cin, H, W, Cout = 1, 48, 14, 14, 288

    x88 = jax.random.normal(k1, (N, Cin, H, W), dtype=jnp.float32)
    x103 = jax.random.normal(k2, (N, Cin, H, W), dtype=jnp.float32)

    # Deterministic parameter init (synthetic; shapes follow the torch module).
    conv_w = 0.1 * jax.random.normal(k3, (Cout, Cin, 1, 1), dtype=jnp.float32)
    gamma1 = 1.0 + 0.01 * jax.random.normal(k4, (Cin,), dtype=jnp.float32)
    beta1 = 0.01 * jax.random.normal(k5, (Cin,), dtype=jnp.float32)
    gamma2 = 1.0 + 0.01 * jax.random.normal(k6, (Cout,), dtype=jnp.float32)
    beta2 = 0.01 * jax.random.normal(k7, (Cout,), dtype=jnp.float32)

    out = fused_bn_add_conv_bn(x88, x103, gamma1, beta1, conv_w, gamma2, beta2)
    out = jax.block_until_ready(out)

    ref = _reference(x88, x103, gamma1, beta1, conv_w, gamma2, beta2)
    assert out.shape == (N, Cout, H, W), out.shape
    assert jnp.allclose(out, ref, rtol=2e-2, atol=2e-2), "mismatch vs reference"

    print("KERNEL_OK")
</pallas_src>

<mosaic_0001>
module attributes {stable_mosaic.version = 11 : i64} {
  func.func @_fused_kernel(%arg0: memref<48x196xf32, #tpu.memory_space<vmem>>, %arg1: memref<48x196xf32, #tpu.memory_space<vmem>>, %arg2: memref<48x1xf32, #tpu.memory_space<vmem>>, %arg3: memref<48x1xf32, #tpu.memory_space<vmem>>, %arg4: memref<288x48xf32, #tpu.memory_space<vmem>>, %arg5: memref<288x1xf32, #tpu.memory_space<vmem>>, %arg6: memref<288x1xf32, #tpu.memory_space<vmem>>, %arg7: memref<288x196xf32, #tpu.memory_space<vmem>>) attributes {dimension_semantics = [], scalar_prefetch = 0 : i64, scratch_operands = 0 : i64, tpu.core_type = #tpu.core_type<tc>} {
    %c0 = arith.constant 0 : index
    %c0_0 = arith.constant 0 : index
    %0 = vector.load %arg0[%c0, %c0_0] : memref<48x196xf32, #tpu.memory_space<vmem>>, vector<48x196xf32>
    %c0_1 = arith.constant 0 : index
    %c0_2 = arith.constant 0 : index
    %1 = vector.load %arg1[%c0_1, %c0_2] : memref<48x196xf32, #tpu.memory_space<vmem>>, vector<48x196xf32>
    %cst = arith.constant dense<0.000000e+00> : vector<48xf32>
    %2 = vector.multi_reduction <add>, %0, %cst [1] : vector<48x196xf32> to vector<48xf32>
    %3 = vector.shape_cast %2 : vector<48xf32> to vector<48x1xf32>
    %cst_3 = arith.constant 0.00510204071 : f32
    %4 = vector.broadcast %cst_3 : f32 to vector<48x1xf32>
    %5 = arith.mulf %3, %4 : vector<48x1xf32>
    %6 = arith.mulf %0, %0 : vector<48x196xf32>
    %cst_4 = arith.constant dense<0.000000e+00> : vector<48xf32>
    %7 = vector.multi_reduction <add>, %6, %cst_4 [1] : vector<48x196xf32> to vector<48xf32>
    %8 = vector.shape_cast %7 : vector<48xf32> to vector<48x1xf32>
    %cst_5 = arith.constant 0.00510204071 : f32
    %9 = vector.broadcast %cst_5 : f32 to vector<48x1xf32>
    %10 = arith.mulf %8, %9 : vector<48x1xf32>
    %11 = arith.mulf %5, %5 : vector<48x1xf32>
    %12 = arith.subf %10, %11 : vector<48x1xf32>
    %c0_6 = arith.constant 0 : index
    %c0_7 = arith.constant 0 : index
    %13 = vector.load %arg2[%c0_6, %c0_7] : memref<48x1xf32, #tpu.memory_space<vmem>>, vector<48x1xf32>
    %cst_8 = arith.constant 1.000000e-03 : f32
    %14 = vector.broadcast %cst_8 : f32 to vector<48x1xf32>
    %15 = arith.addf %12, %14 : vector<48x1xf32>
    %16 = math.rsqrt %15 : vector<48x1xf32>
    %17 = arith.mulf %13, %16 : vector<48x1xf32>
    %c0_9 = arith.constant 0 : index
    %c0_10 = arith.constant 0 : index
    %18 = vector.load %arg3[%c0_9, %c0_10] : memref<48x1xf32, #tpu.memory_space<vmem>>, vector<48x1xf32>
    %19 = arith.mulf %5, %17 : vector<48x1xf32>
    %20 = arith.subf %18, %19 : vector<48x1xf32>
    %21 = vector.broadcast %17 : vector<48x1xf32> to vector<48x196xf32>
    %22 = arith.mulf %0, %21 : vector<48x196xf32>
    %23 = arith.addf %1, %22 : vector<48x196xf32>
    %24 = vector.broadcast %20 : vector<48x1xf32> to vector<48x196xf32>
    %25 = arith.addf %23, %24 : vector<48x196xf32>
    %c0_11 = arith.constant 0 : index
    %c0_12 = arith.constant 0 : index
    %26 = vector.load %arg4[%c0_11, %c0_12] : memref<288x48xf32, #tpu.memory_space<vmem>>, vector<288x48xf32>
    %27 = arith.truncf %26 : vector<288x48xf32> to vector<288x48xbf16>
    %28 = arith.truncf %25 : vector<48x196xf32> to vector<48x196xbf16>
    %cst_13 = arith.constant dense<0.000000e+00> : vector<288x196xf32>
    %29 = tpu.matmul %27, %28, %cst_13 {dimension_numbers = #tpu.dot_dimension_numbers<[1], [0], [0], [1], [0, 0, 1, 1], [], []>} : vector<288x48xbf16>, vector<48x196xbf16>, vector<288x196xf32> -> vector<288x196xf32>
    %cst_14 = arith.constant dense<0.000000e+00> : vector<48xf32>
    %30 = vector.multi_reduction <add>, %25, %cst_14 [1] : vector<48x196xf32> to vector<48xf32>
    %31 = vector.shape_cast %30 : vector<48xf32> to vector<48x1xf32>
    %cst_15 = arith.constant 0.00510204071 : f32
    %32 = vector.broadcast %cst_15 : f32 to vector<48x1xf32>
    %33 = arith.mulf %31, %32 : vector<48x1xf32>
    %cst_16 = arith.constant dense<0.000000e+00> : vector<288x1xf32>
    %34 = tpu.matmul %26, %33, %cst_16 {dimension_numbers = #tpu.dot_dimension_numbers<[1], [0], [0], [1], [0, 0, 1, 1], [], []>} : vector<288x48xf32>, vector<48x1xf32>, vector<288x1xf32> -> vector<288x1xf32>
    %35 = arith.mulf %29, %29 : vector<288x196xf32>
    %cst_17 = arith.constant dense<0.000000e+00> : vector<288xf32>
    %36 = vector.multi_reduction <add>, %35, %cst_17 [1] : vector<288x196xf32> to vector<288xf32>
    %37 = vector.shape_cast %36 : vector<288xf32> to vector<288x1xf32>
    %cst_18 = arith.constant 0.00510204071 : f32
    %38 = vector.broadcast %cst_18 : f32 to vector<288x1xf32>
    %39 = arith.mulf %37, %38 : vector<288x1xf32>
    %40 = arith.mulf %34, %34 : vector<288x1xf32>
    %41 = arith.subf %39, %40 : vector<288x1xf32>
    %c0_19 = arith.constant 0 : index
    %c0_20 = arith.constant 0 : index
    %42 = vector.load %arg5[%c0_19, %c0_20] : memref<288x1xf32, #tpu.memory_space<vmem>>, vector<288x1xf32>
    %cst_21 = arith.constant 1.000000e-03 : f32
    %43 = vector.broadcast %cst_21 : f32 to vector<288x1xf32>
    %44 = arith.addf %41, %43 : vector<288x1xf32>
    %45 = math.rsqrt %44 : vector<288x1xf32>
    %46 = arith.mulf %42, %45 : vector<288x1xf32>
    %c0_22 = arith.constant 0 : index
    %c0_23 = arith.constant 0 : index
    %47 = vector.load %arg6[%c0_22, %c0_23] : memref<288x1xf32, #tpu.memory_space<vmem>>, vector<288x1xf32>
    %48 = arith.mulf %34, %46 : vector<288x1xf32>
    %49 = arith.subf %47, %48 : vector<288x1xf32>
    %50 = vector.broadcast %46 : vector<288x1xf32> to vector<288x196xf32>
    %51 = arith.mulf %29, %50 : vector<288x196xf32>
    %52 = vector.broadcast %49 : vector<288x1xf32> to vector<288x196xf32>
    %53 = arith.addf %51, %52 : vector<288x196xf32>
    %c0_24 = arith.constant 0 : index
    %c0_25 = arith.constant 0 : index
    %54 = vector.load %arg7[%c0_24, %c0_25] : memref<288x196xf32, #tpu.memory_space<vmem>>, vector<288x196xf32>
    tpu.vector_store %arg7[%c0_24, %c0_25], %53 {strides = array<i32>} : memref<288x196xf32, #tpu.memory_space<vmem>>, vector<288x196xf32>,
    return
  }
}

</mosaic_0001>

<llo_original>
// kernel: tpu_custom_call.1
$region0: #{tpu_custom_call.1}
  #allocation0 [shape = 'u32[]', space=smem, size = 0x4, offset = 0x4, fixed_abs, tag = 'smem constant byte address 0x4 - core index']
  #allocation1 [shape = 'u32[144,128]{1,0:T(1,128)}', space=vmem, size = 0x12000, scoped, tag = 'internal scratch']
  %s0 = inlined_call_operand.vmem [shape: f32[48,196], index: 0, kind: input, shape index: {}]
  %s1 = inlined_call_operand.vmem [shape: f32[48,196], index: 1, kind: input, shape index: {}]
  %s2 = inlined_call_operand.vmem [shape: f32[48,1], index: 2, kind: input, shape index: {}]
  %s3 = inlined_call_operand.vmem [shape: f32[48,1], index: 3, kind: input, shape index: {}]
  %s4 = inlined_call_operand.vmem [shape: f32[288,48], index: 4, kind: input, shape index: {}]
  %s5 = inlined_call_operand.vmem [shape: f32[288,1], index: 5, kind: input, shape index: {}]
  %s6 = inlined_call_operand.vmem [shape: f32[288,1], index: 6, kind: input, shape index: {}]
  %s7 = inlined_call_operand.hbm [shape: f32[288,196], index: 7, kind: output, shape index: {}]
  %s8 = sld [smem:[#allocation0]]
  $region38: #{tpu_custom_call.1} parent=0
    _
  %s10 = ssub.s32 1, %s8
  %s11 = scalar_select 0, %s10, %s8
  $region1: #{tpu_custom_call.1} parent=0
    #allocation2 [shape = 'u8[294912]{0}', space=vmem, size = 0x48000, scoped, tag = 'output window, operand 0, single buffered']
    #allocation3 [shape = 's32[1]{0}', space=sflag, size = 0x4, scoped, tag = 'scoped memory for tpu_custom_call.1']
    %12 = vsyncpa [#allocation3], 0
    // Predicated region
    $region2: #{tpu_custom_call.1} parent=1 // pred_check
      _
    $region3: #{tpu_custom_call.1} parent=1 // pred_check_branch
      %14 = sbr.rel (0) target = $region5
    $region4: #{tpu_custom_call.1} parent=1 // pred_region
      _
    $region5: #{tpu_custom_call.1} parent=1 // pred_fallthru
      _
    // Predicated region
    $region6: #{tpu_custom_call.1} parent=1 // pred_check
      _
    $region7: #{tpu_custom_call.1} parent=1 // pred_check_branch
      %16 = sbr.rel (0) target = $region9
    $region8: #{tpu_custom_call.1} parent=1 // pred_region
      _
    $region9: #{tpu_custom_call.1} parent=1 // pred_fallthru
      _
    // Predicated region
    $region10: #{tpu_custom_call.1} parent=1 // pred_check
      _
    $region11: #{tpu_custom_call.1} parent=1 // pred_check_branch
      %18 = sbr.rel (0) target = $region13
    $region12: #{tpu_custom_call.1} parent=1 // pred_region
      _
    $region13: #{tpu_custom_call.1} parent=1 // pred_fallthru
      _
    // Predicated region
    $region14: #{tpu_custom_call.1} parent=1 // pred_check
      _
    $region15: #{tpu_custom_call.1} parent=1 // pred_check_branch
      %20 = sbr.rel (0) target = $region17
    $region16: #{tpu_custom_call.1} parent=1 // pred_region
      _
    $region17: #{tpu_custom_call.1} parent=1 // pred_fallthru
      _
    // Predicated region
    $region18: #{tpu_custom_call.1} parent=1 // pred_check
      _
    $region19: #{tpu_custom_call.1} parent=1 // pred_check_branch
      %22 = sbr.rel (0) target = $region21
    $region20: #{tpu_custom_call.1} parent=1 // pred_region
      _
    $region21: #{tpu_custom_call.1} parent=1 // pred_fallthru
      _
    // Predicated region
    $region22: #{tpu_custom_call.1} parent=1 // pred_check
      _
    $region23: #{tpu_custom_call.1} parent=1 // pred_check_branch
      %24 = sbr.rel (0) target = $region25
    $region24: #{tpu_custom_call.1} parent=1 // pred_region
      _
    $region25: #{tpu_custom_call.1} parent=1 // pred_fallthru
      _
    // Predicated region
    $region26: #{tpu_custom_call.1} parent=1 // pred_check
      _
    $region27: #{tpu_custom_call.1} parent=1 // pred_check_branch
      %26 = sbr.rel (0) target = $region29
    $region28: #{tpu_custom_call.1} parent=1 // pred_region
      _
    $region29: #{tpu_custom_call.1} parent=1 // pred_fallthru
      _
    %v28 = vld [vmem:[%s0] sm:$0xff]
    %v29 = vld [vmem:[%s0 + $0x8] sm:$0xff]
    %v30 = vld [vmem:[%s0 + $0x10] sm:$0xff]
    %v31 = vld [vmem:[%s0 + $0x18] sm:$0xff]
    %v32 = vld [vmem:[%s0 + $0x20] sm:$0xff]
    %v33 = vld [vmem:[%s0 + $0x28] sm:$0xff]
    %v34 = vld [vmem:[%s0 + $0x30] sm:$0xff]
    %v35 = vld [vmem:[%s0 + $0x38] sm:$0xff]
    %v36 = vld [vmem:[%s0 + $0x40] sm:$0xff]
    %v37 = vld [vmem:[%s0 + $0x48] sm:$0xff]
    %v38 = vld [vmem:[%s0 + $0x50] sm:$0xff]
    %v39 = vld [vmem:[%s0 + $0x58] sm:$0xff]
    %v40 = vld [vmem:[%s1] sm:$0xff]
    %v41 = vld [vmem:[%s1 + $0x8] sm:$0xff]
    %v42 = vld [vmem:[%s1 + $0x10] sm:$0xff]
    %v43 = vld [vmem:[%s1 + $0x18] sm:$0xff]
    %v44 = vld [vmem:[%s1 + $0x20] sm:$0xff]
    %v45 = vld [vmem:[%s1 + $0x28] sm:$0xff]
    %v46 = vld [vmem:[%s1 + $0x30] sm:$0xff]
    %v47 = vld [vmem:[%s1 + $0x38] sm:$0xff]
    %v48 = vld [vmem:[%s1 + $0x40] sm:$0xff]
    %v49 = vld [vmem:[%s1 + $0x48] sm:$0xff]
    %v50 = vld [vmem:[%s1 + $0x50] sm:$0xff]
    %v51 = vld [vmem:[%s1 + $0x58] sm:$0xff]
    %vm52 = vcmask 556032
    %v53 = vsel %vm52, %v29, 0.0
    %v54 = vadd.f32 %v28, %v53
    %55 = vadd.xlane.f32.xlu0 %v54
    %v56 = vpop.xlane.xlu0 %55
    %v57 = vsel %vm52, %v31, 0.0
    %v58 = vadd.f32 %v30, %v57
    %59 = vadd.xlane.f32.xlu0 %v58
    %v60 = vpop.xlane.xlu0 %59
    %v61 = vsel %vm52, %v33, 0.0
    %v62 = vadd.f32 %v32, %v61
    %63 = vadd.xlane.f32.xlu0 %v62
    %v64 = vpop.xlane.xlu0 %63
    %v65 = vsel %vm52, %v35, 0.0
    %v66 = vadd.f32 %v34, %v65
    %67 = vadd.xlane.f32.xlu0 %v66
    %v68 = vpop.xlane.xlu0 %67
    %v69 = vsel %vm52, %v37, 0.0
    %v70 = vadd.f32 %v36, %v69
    %71 = vadd.xlane.f32.xlu0 %v70
    %v72 = vpop.xlane.xlu0 %71
    %v73 = vsel %vm52, %v39, 0.0
    %v74 = vadd.f32 %v38, %v73
    %75 = vadd.xlane.f32.xlu0 %v74
    %v76 = vpop.xlane.xlu0 %75
    %v77 = vmul.f32 %v56, 0.0051020407
    %v78 = vmul.f32 %v60, 0.0051020407
    %v79 = vmul.f32 %v64, 0.0051020407
    %v80 = vmul.f32 %v68, 0.0051020407
    %v81 = vmul.f32 %v72, 0.0051020407
    %v82 = vmul.f32 %v76, 0.0051020407
    %v83 = vmul.f32 %v28, %v28
    %v84 = vmul.f32 %v29, %v29
    %v85 = vmul.f32 %v30, %v30
    %v86 = vmul.f32 %v31, %v31
    %v87 = vmul.f32 %v32, %v32
    %v88 = vmul.f32 %v33, %v33
    %v89 = vmul.f32 %v34, %v34
    %v90 = vmul.f32 %v35, %v35
    %v91 = vmul.f32 %v36, %v36
    %v92 = vmul.f32 %v37, %v37
    %v93 = vmul.f32 %v38, %v38
    %v94 = vmul.f32 %v39, %v39
    %v95 = vsel %vm52, %v84, 0.0
    %v96 = vadd.f32 %v83, %v95
    %97 = vadd.xlane.f32.xlu0 %v96
    %v98 = vpop.xlane.xlu0 %97
    %v99 = vsel %vm52, %v86, 0.0
    %v100 = vadd.f32 %v85, %v99
    %101 = vadd.xlane.f32.xlu0 %v100
    %v102 = vpop.xlane.xlu0 %101
    %v103 = vsel %vm52, %v88, 0.0
    %v104 = vadd.f32 %v87, %v103
    %105 = vadd.xlane.f32.xlu0 %v104
    %v106 = vpop.xlane.xlu0 %105
    %v107 = vsel %vm52, %v90, 0.0
    %v108 = vadd.f32 %v89, %v107
    %109 = vadd.xlane.f32.xlu0 %v108
    %v110 = vpop.xlane.xlu0 %109
    %v111 = vsel %vm52, %v92, 0.0
    %v112 = vadd.f32 %v91, %v111
    %113 = vadd.xlane.f32.xlu0 %v112
    %v114 = vpop.xlane.xlu0 %113
    %v115 = vsel %vm52, %v94, 0.0
    %v116 = vadd.f32 %v93, %v115
    %117 = vadd.xlane.f32.xlu0 %v116
    %v118 = vpop.xlane.xlu0 %117
    %v119 = vmul.f32 %v98, 0.0051020407
    %v120 = vmul.f32 %v102, 0.0051020407
    %v121 = vmul.f32 %v106, 0.0051020407
    %v122 = vmul.f32 %v110, 0.0051020407
    %v123 = vmul.f32 %v114, 0.0051020407
    %v124 = vmul.f32 %v118, 0.0051020407
    %v125 = vmul.f32 %v77, %v77
    %v126 = vmul.f32 %v78, %v78
    %v127 = vmul.f32 %v79, %v79
    %v128 = vmul.f32 %v80, %v80
    %v129 = vmul.f32 %v81, %v81
    %v130 = vmul.f32 %v82, %v82
    %v131 = vsub.f32 %v119, %v125
    %v132 = vsub.f32 %v120, %v126
    %v133 = vsub.f32 %v121, %v127
    %v134 = vsub.f32 %v122, %v128
    %v135 = vsub.f32 %v123, %v129
    %v136 = vsub.f32 %v124, %v130
    %v137 = vld [vmem:[%s2] sm:$0xff]
    %v138 = vld [vmem:[%s2 + $0x8] sm:$0xff]
    %v139 = vld [vmem:[%s2 + $0x10] sm:$0xff]
    %v140 = vld [vmem:[%s2 + $0x18] sm:$0xff]
    %v141 = vld [vmem:[%s2 + $0x20] sm:$0xff]
    %v142 = vld [vmem:[%s2 + $0x28] sm:$0xff]
    %v143 = vadd.f32 %v131, 0.001
    %v144 = vadd.f32 %v132, 0.001
    %v145 = vadd.f32 %v133, 0.001
    %v146 = vadd.f32 %v134, 0.001
    %v147 = vadd.f32 %v135, 0.001
    %v148 = vadd.f32 %v136, 0.001
    %v149 = vrsqrt.pop %v143
    %v150 = vrsqrt.pop %v144
    %v151 = vrsqrt.pop %v145
    %v152 = vrsqrt.pop %v146
    %v153 = vrsqrt.pop %v147
    %v154 = vrsqrt.pop %v148
    %v155 = vmul.f32 %v137, %v149
    %v156 = vmul.f32 %v138, %v150
    %v157 = vmul.f32 %v139, %v151
    %v158 = vmul.f32 %v140, %v152
    %v159 = vmul.f32 %v141, %v153
    %v160 = vmul.f32 %v142, %v154
    %v161 = vld [vmem:[%s3] sm:$0xff]
    %v162 = vld [vmem:[%s3 + $0x8] sm:$0xff]
    %v163 = vld [vmem:[%s3 + $0x10] sm:$0xff]
    %v164 = vld [vmem:[%s3 + $0x18] sm:$0xff]
    %v165 = vld [vmem:[%s3 + $0x20] sm:$0xff]
    %v166 = vld [vmem:[%s3 + $0x28] sm:$0xff]
    %v167 = vmul.f32 %v77, %v155
    %v168 = vmul.f32 %v78, %v156
    %v169 = vmul.f32 %v79, %v157
    %v170 = vmul.f32 %v80, %v158
    %v171 = vmul.f32 %v81, %v159
    %v172 = vmul.f32 %v82, %v160
    %v173 = vsub.f32 %v161, %v167
    %v174 = vsub.f32 %v162, %v168
    %v175 = vsub.f32 %v163, %v169
    %v176 = vsub.f32 %v164, %v170
    %v177 = vsub.f32 %v165, %v171
    %v178 = vsub.f32 %v166, %v172
    %180 = vset.pattern.permute.xlu0 0
    %181 = vperm.xlu0 %180, %v155
    %v182 = vpop.permute.xlu0 %181
    %185 = vset.pattern.permute.xlu0 0
    %186 = vperm.xlu0 %185, %v156
    %v187 = vpop.permute.xlu0 %186
    %190 = vset.pattern.permute.xlu0 0
    %191 = vperm.xlu0 %190, %v157
    %v192 = vpop.permute.xlu0 %191
    %195 = vset.pattern.permute.xlu0 0
    %196 = vperm.xlu0 %195, %v158
    %v197 = vpop.permute.xlu0 %196
    %200 = vset.pattern.permute.xlu0 0
    %201 = vperm.xlu0 %200, %v159
    %v202 = vpop.permute.xlu0 %201
    %205 = vset.pattern.permute.xlu0 0
    %206 = vperm.xlu0 %205, %v160
    %v207 = vpop.permute.xlu0 %206
    %v209 = vmul.f32 %v28, %v182
    %v210 = vmul.f32 %v29, %v182
    %v211 = vmul.f32 %v30, %v187
    %v212 = vmul.f32 %v31, %v187
    %v213 = vmul.f32 %v32, %v192
    %v214 = vmul.f32 %v33, %v192
    %v215 = vmul.f32 %v34, %v197
    %v216 = vmul.f32 %v35, %v197
    %v217 = vmul.f32 %v36, %v202
    %v218 = vmul.f32 %v37, %v202
    %v219 = vmul.f32 %v38, %v207
    %v220 = vmul.f32 %v39, %v207
    %v221 = vadd.f32 %v40, %v209
    %v222 = vadd.f32 %v41, %v210
    %v223 = vadd.f32 %v42, %v211
    %v224 = vadd.f32 %v43, %v212
    %v225 = vadd.f32 %v44, %v213
    %v226 = vadd.f32 %v45, %v214
    %v227 = vadd.f32 %v46, %v215
    %v228 = vadd.f32 %v47, %v216
    %v229 = vadd.f32 %v48, %v217
    %v230 = vadd.f32 %v49, %v218
    %v231 = vadd.f32 %v50, %v219
    %v232 = vadd.f32 %v51, %v220
    %234 = vset.pattern.permute.xlu0 0
    %235 = vperm.xlu0 %234, %v173
    %v236 = vpop.permute.xlu0 %235
    %239 = vset.pattern.permute.xlu0 0
    %240 = vperm.xlu0 %239, %v174
    %v241 = vpop.permute.xlu0 %240
    %244 = vset.pattern.permute.xlu0 0
    %245 = vperm.xlu0 %244, %v175
    %v246 = vpop.permute.xlu0 %245
    %249 = vset.pattern.permute.xlu0 0
    %250 = vperm.xlu0 %249, %v176
    %v251 = vpop.permute.xlu0 %250
    %254 = vset.pattern.permute.xlu0 0
    %255 = vperm.xlu0 %254, %v177
    %v256 = vpop.permute.xlu0 %255
    %259 = vset.pattern.permute.xlu0 0
    %260 = vperm.xlu0 %259, %v178
    %v261 = vpop.permute.xlu0 %260
    %v263 = vadd.f32 %v221, %v236
    %v264 = vadd.f32 %v222, %v236
    %v265 = vadd.f32 %v223, %v241
    %v266 = vadd.f32 %v224, %v241
    %v267 = vadd.f32 %v225, %v246
    %v268 = vadd.f32 %v226, %v246
    %v269 = vadd.f32 %v227, %v251
    %v270 = vadd.f32 %v228, %v251
    %v271 = vadd.f32 %v229, %v256
    %v272 = vadd.f32 %v230, %v256
    %v273 = vadd.f32 %v231, %v261
    %v274 = vadd.f32 %v232, %v261
    %v275 = vld [vmem:[%s4] sm:$0xff]
    %v276 = vld [vmem:[%s4 + $0x8] sm:$0xff]
    %v277 = vld [vmem:[%s4 + $0x10] sm:$0xff]
    %v278 = vld [vmem:[%s4 + $0x18] sm:$0xff]
    %v279 = vld [vmem:[%s4 + $0x20] sm:$0xff]
    %v280 = vld [vmem:[%s4 + $0x28] sm:$0xff]
    %v281 = vld [vmem:[%s4 + $0x30] sm:$0xff]
    %v282 = vld [vmem:[%s4 + $0x38] sm:$0xff]
    %v283 = vld [vmem:[%s4 + $0x40] sm:$0xff]
    %v284 = vld [vmem:[%s4 + $0x48] sm:$0xff]
    %v285 = vld [vmem:[%s4 + $0x50] sm:$0xff]
    %v286 = vld [vmem:[%s4 + $0x58] sm:$0xff]
    %v287 = vld [vmem:[%s4 + $0x60] sm:$0xff]
    %v288 = vld [vmem:[%s4 + $0x68] sm:$0xff]
    %v289 = vld [vmem:[%s4 + $0x70] sm:$0xff]
    %v290 = vld [vmem:[%s4 + $0x78] sm:$0xff]
    %v291 = vld [vmem:[%s4 + $0x80] sm:$0xff]
    %v292 = vld [vmem:[%s4 + $0x88] sm:$0xff]
    %v293 = vld [vmem:[%s4 + $0x90] sm:$0xff]
    %v294 = vld [vmem:[%s4 + $0x98] sm:$0xff]
    %v295 = vld [vmem:[%s4 + $0xa0] sm:$0xff]
    %v296 = vld [vmem:[%s4 + $0xa8] sm:$0xff]
    %v297 = vld [vmem:[%s4 + $0xb0] sm:$0xff]
    %v298 = vld [vmem:[%s4 + $0xb8] sm:$0xff]
    %v299 = vld [vmem:[%s4 + $0xc0] sm:$0xff]
    %v300 = vld [vmem:[%s4 + $0xc8] sm:$0xff]
    %v301 = vld [vmem:[%s4 + $0xd0] sm:$0xff]
    %v302 = vld [vmem:[%s4 + $0xd8] sm:$0xff]
    %v303 = vld [vmem:[%s4 + $0xe0] sm:$0xff]
    %v304 = vld [vmem:[%s4 + $0xe8] sm:$0xff]
    %v305 = vld [vmem:[%s4 + $0xf0] sm:$0xff]
    %v306 = vld [vmem:[%s4 + $0xf8] sm:$0xff]
    %v307 = vld [vmem:[%s4 + $0x100] sm:$0xff]
    %v308 = vld [vmem:[%s4 + $0x108] sm:$0xff]
    %v309 = vld [vmem:[%s4 + $0x110] sm:$0xff]
    %v310 = vld [vmem:[%s4 + $0x118] sm:$0xff]
    %v311 = vpack.c.bf16 %v276, %v275
    %v312 = vpack.c.bf16 %v278, %v277
    %v313 = vpack.c.bf16 %v280, %v279
    %v314 = vpack.c.bf16 %v282, %v281
    %v315 = vpack.c.bf16 %v284, %v283
    %v316 = vpack.c.bf16 %v286, %v285
    %v317 = vpack.c.bf16 %v288, %v287
    %v318 = vpack.c.bf16 %v290, %v289
    %v319 = vpack.c.bf16 %v292, %v291
    %v320 = vpack.c.bf16 %v294, %v293
    %v321 = vpack.c.bf16 %v296, %v295
    %v322 = vpack.c.bf16 %v298, %v297
    %v323 = vpack.c.bf16 %v300, %v299
    %v324 = vpack.c.bf16 %v302, %v301
    %v325 = vpack.c.bf16 %v304, %v303
    %v326 = vpack.c.bf16 %v306, %v305
    %v327 = vpack.c.bf16 %v308, %v307
    %v328 = vpack.c.bf16 %v310, %v309
    %v329 = vpack.c.bf16 %v265, %v263
    %v330 = vpack.c.bf16 %v266, %v264
    %v331 = vpack.c.bf16 %v269, %v267
    %v332 = vpack.c.bf16 %v270, %v268
    %v333 = vpack.c.bf16 %v273, %v271
    %v334 = vpack.c.bf16 %v274, %v272
    %vm335 = vcmask 392192
    %v337 = vsel %vm335, %v311, 0
    %v340 = vsel %vm335, %v312, 0
    %v343 = vsel %vm335, %v313, 0
    %v346 = vsel %vm335, %v314, 0
    %v349 = vsel %vm335, %v315, 0
    %v352 = vsel %vm335, %v316, 0
    %v355 = vsel %vm335, %v317, 0
    %v358 = vsel %vm335, %v318, 0
    %v361 = vsel %vm335, %v319, 0
    %v364 = vsel %vm335, %v320, 0
    %v367 = vsel %vm335, %v321, 0
    %v370 = vsel %vm335, %v322, 0
    %v373 = vsel %vm335, %v323, 0
    %v376 = vsel %vm335, %v324, 0
    %v379 = vsel %vm335, %v325, 0
    %v382 = vsel %vm335, %v326, 0
    %v385 = vsel %vm335, %v327, 0
    %v388 = vsel %vm335, %v328, 0
    %390 = vmatprep.subr.bf16.mxu0 %v330
    %391 = vmatpush1.bf16.msra.mxu0 %v329
    %392 = vmatprep.subr.bf16.mxu0 %v332
    %393 = vmatpush1.bf16.msra.mxu0 %v331
    %394 = vmatprep.subr.bf16.mxu0 %v334
    %395 = vmatpush1.bf16.msra.mxu0 %v333
    %396 = vmatprep.subr.bf16.mxu0 0
    %397 = vmatpush1.bf16.msra.mxu0 0
    %398 = vmatprep.subr.bf16.mxu0 0
    %399 = vmatpush1.bf16.msra.mxu0 0
    %400 = vmatprep.subr.bf16.mxu0 0
    %401 = vmatpush1.bf16.msra.mxu0 0
    %402 = vmatprep.subr.bf16.mxu0 0
    %403 = vmatpush1.bf16.msra.mxu0 0
    %404 = vmatprep.subr.bf16.mxu0 0
    %405 = vmatpush1.bf16.msra.mxu0 0
    %406 = vmatprep.subr.bf16.mxu0 0
    %407 = vmatpush1.bf16.msra.mxu0 0
    %408 = vmatprep.subr.bf16.mxu0 0
    %409 = vmatpush1.bf16.msra.mxu0 0
    %410 = vmatprep.subr.bf16.mxu0 0
    %411 = vmatpush1.bf16.msra.mxu0 0
    %412 = vmatprep.subr.bf16.mxu0 0
    %413 = vmatpush1.bf16.msra.mxu0 0
    %414 = vmatprep.subr.bf16.mxu0 0
    %415 = vmatpush1.bf16.msra.mxu0 0
    %416 = vmatprep.subr.bf16.mxu0 0
    %417 = vmatpush1.bf16.msra.mxu0 0
    %418 = vmatprep.subr.bf16.mxu0 0
    %419 = vmatpush1.bf16.msra.mxu0 0
    %420 = vmatprep.subr.bf16.mxu0 0
    %421 = vmatpush1.bf16.msra.mxu0 0
    %422 = vmatprep.mubr.bf16.mxu0 0
    %423 = vmatmul.mubr.bf16.gmra.mrb[0].mxu0 %v337
    %v424 = vpop.f32.mrb[0].mxu0
    %v425 = vadd.f32 0.0, %v424
    %v426 = vpop.f32.mrb[0].mxu0
    %v427 = vadd.f32 0.0, %v426
    %v428 = vpop.f32.mrb[0].mxu0
    %v429 = vadd.f32 0.0, %v428
    %v430 = vpop.f32.mrb[0].mxu0
    %v431 = vadd.f32 0.0, %v430
    %432 = vmatprep.mubr.bf16.mxu0 0
    %433 = vmatmul.mubr.bf16.gmra.mrb[0].mxu0 %v340
    %v434 = vpop.f32.mrb[0].mxu0
    %v435 = vadd.f32 0.0, %v434
    %v436 = vpop.f32.mrb[0].mxu0
    %v437 = vadd.f32 0.0, %v436
    %v438 = vpop.f32.mrb[0].mxu0
    %v439 = vadd.f32 0.0, %v438
    %v440 = vpop.f32.mrb[0].mxu0
    %v441 = vadd.f32 0.0, %v440
    %442 = vmatprep.mubr.bf16.mxu0 0
    %443 = vmatmul.mubr.bf16.gmra.mrb[0].mxu0 %v343
    %v444 = vpop.f32.mrb[0].mxu0
    %v445 = vadd.f32 0.0, %v444
    %v446 = vpop.f32.mrb[0].mxu0
    %v447 = vadd.f32 0.0, %v446
    %v448 = vpop.f32.mrb[0].mxu0
    %v449 = vadd.f32 0.0, %v448
    %v450 = vpop.f32.mrb[0].mxu0
    %v451 = vadd.f32 0.0, %v450
    %452 = vmatprep.mubr.bf16.mxu0 0
    %453 = vmatmul.mubr.bf16.gmra.mrb[0].mxu0 %v346
    %v454 = vpop.f32.mrb[0].mxu0
    %v455 = vadd.f32 0.0, %v454
    %v456 = vpop.f32.mrb[0].mxu0
    %v457 = vadd.f32 0.0, %v456
    %v458 = vpop.f32.mrb[0].mxu0
    %v459 = vadd.f32 0.0, %v458
    %v460 = vpop.f32.mrb[0].mxu0
    %v461 = vadd.f32 0.0, %v460
    %462 = vmatprep.mubr.bf16.mxu0 0
    %463 = vmatmul.mubr.bf16.gmra.mrb[0].mxu0 %v349
    %v464 = vpop.f32.mrb[0].mxu0
    %v465 = vadd.f32 0.0, %v464
    %v466 = vpop.f32.mrb[0].mxu0
    %v467 = vadd.f32 0.0, %v466
    %v468 = vpop.f32.mrb[0].mxu0
    %v469 = vadd.f32 0.0, %v468
    %v470 = vpop.f32.mrb[0].mxu0
    %v471 = vadd.f32 0.0, %v470
    %472 = vmatprep.mubr.bf16.mxu0 0
    %473 = vmatmul.mubr.bf16.gmra.mrb[0].mxu0 %v352
    %v474 = vpop.f32.mrb[0].mxu0
    %v475 = vadd.f32 0.0, %v474
    %v476 = vpop.f32.mrb[0].mxu0
    %v477 = vadd.f32 0.0, %v476
    %v478 = vpop.f32.mrb[0].mxu0
    %v479 = vadd.f32 0.0, %v478
    %v480 = vpop.f32.mrb[0].mxu0
    %v481 = vadd.f32 0.0, %v480
    %482 = vmatprep.mubr.bf16.mxu0 0
    %483 = vmatmul.mubr.bf16.gmra.mrb[0].mxu0 %v355
    %v484 = vpop.f32.mrb[0].mxu0
    %v485 = vadd.f32 0.0, %v484
    %v486 = vpop.f32.mrb[0].mxu0
    %v487 = vadd.f32 0.0, %v486
    %v488 = vpop.f32.mrb[0].mxu0
    %v489 = vadd.f32 0.0, %v488
    %v490 = vpop.f32.mrb[0].mxu0
    %v491 = vadd.f32 0.0, %v490
    %492 = vmatprep.mubr.bf16.mxu0 0
    %493 = vmatmul.mubr.bf16.gmra.mrb[0].mxu0 %v358
    %v494 = vpop.f32.mrb[0].mxu0
    %v495 = vadd.f32 0.0, %v494
    %v496 = vpop.f32.mrb[0].mxu0
    %v497 = vadd.f32 0.0, %v496
    %v498 = vpop.f32.mrb[0].mxu0
    %v499 = vadd.f32 0.0, %v498
    %v500 = vpop.f32.mrb[0].mxu0
    %v501 = vadd.f32 0.0, %v500
    %502 = vmatprep.mubr.bf16.mxu0 0
    %503 = vmatmul.mubr.bf16.gmra.mrb[0].mxu0 %v361
    %v504 = vpop.f32.mrb[0].mxu0
    %v505 = vadd.f32 0.0, %v504
    %v506 = vpop.f32.mrb[0].mxu0
    %v507 = vadd.f32 0.0, %v506
    %v508 = vpop.f32.mrb[0].mxu0
    %v509 = vadd.f32 0.0, %v508
    %v510 = vpop.f32.mrb[0].mxu0
    %v511 = vadd.f32 0.0, %v510
    %512 = vmatprep.mubr.bf16.mxu0 0
    %513 = vmatmul.mubr.bf16.gmra.mrb[0].mxu0 %v364
    %v514 = vpop.f32.mrb[0].mxu0
    %v515 = vadd.f32 0.0, %v514
    %v516 = vpop.f32.mrb[0].mxu0
    %v517 = vadd.f32 0.0, %v516
    %v518 = vpop.f32.mrb[0].mxu0
    %v519 = vadd.f32 0.0, %v518
    %v520 = vpop.f32.mrb[0].mxu0
    %v521 = vadd.f32 0.0, %v520
    %522 = vmatprep.mubr.bf16.mxu0 0
    %523 = vmatmul.mubr.bf16.gmra.mrb[0].mxu0 %v367
    %v524 = vpop.f32.mrb[0].mxu0
    %v525 = vadd.f32 0.0, %v524
    %v526 = vpop.f32.mrb[0].mxu0
    %v527 = vadd.f32 0.0, %v526
    %v528 = vpop.f32.mrb[0].mxu0
    %v529 = vadd.f32 0.0, %v528
    %v530 = vpop.f32.mrb[0].mxu0
    %v531 = vadd.f32 0.0, %v530
    %532 = vmatprep.mubr.bf16.mxu0 0
    %533 = vmatmul.mubr.bf16.gmra.mrb[0].mxu0 %v370
    %v534 = vpop.f32.mrb[0].mxu0
    %v535 = vadd.f32 0.0, %v534
    %v536 = vpop.f32.mrb[0].mxu0
    %v537 = vadd.f32 0.0, %v536
    %v538 = vpop.f32.mrb[0].mxu0
    %v539 = vadd.f32 0.0, %v538
    %v540 = vpop.f32.mrb[0].mxu0
    %v541 = vadd.f32 0.0, %v540
    %542 = vmatprep.mubr.bf16.mxu0 0
    %543 = vmatmul.mubr.bf16.gmra.mrb[0].mxu0 %v373
    %v544 = vpop.f32.mrb[0].mxu0
    %v545 = vadd.f32 0.0, %v544
    %v546 = vpop.f32.mrb[0].mxu0
    %v547 = vadd.f32 0.0, %v546
    %v548 = vpop.f32.mrb[0].mxu0
    %v549 = vadd.f32 0.0, %v548
    %v550 = vpop.f32.mrb[0].mxu0
    %v551 = vadd.f32 0.0, %v550
    %552 = vmatprep.mubr.bf16.mxu0 0
    %553 = vmatmul.mubr.bf16.gmra.mrb[0].mxu0 %v376
    %v554 = vpop.f32.mrb[0].mxu0
    %v555 = vadd.f32 0.0, %v554
    %v556 = vpop.f32.mrb[0].mxu0
    %v557 = vadd.f32 0.0, %v556
    %v558 = vpop.f32.mrb[0].mxu0
    %v559 = vadd.f32 0.0, %v558
    %v560 = vpop.f32.mrb[0].mxu0
    %v561 = vadd.f32 0.0, %v560
    %562 = vmatprep.mubr.bf16.mxu0 0
    %563 = vmatmul.mubr.bf16.gmra.mrb[0].mxu0 %v379
    %v564 = vpop.f32.mrb[0].mxu0
    %v565 = vadd.f32 0.0, %v564
    %v566 = vpop.f32.mrb[0].mxu0
    %v567 = vadd.f32 0.0, %v566
    %v568 = vpop.f32.mrb[0].mxu0
    %v569 = vadd.f32 0.0, %v568
    %v570 = vpop.f32.mrb[0].mxu0
    %v571 = vadd.f32 0.0, %v570
    %572 = vmatprep.mubr.bf16.mxu0 0
    %573 = vmatmul.mubr.bf16.gmra.mrb[0].mxu0 %v382
    %v574 = vpop.f32.mrb[0].mxu0
    %v575 = vadd.f32 0.0, %v574
    %v576 = vpop.f32.mrb[0].mxu0
    %v577 = vadd.f32 0.0, %v576
    %v578 = vpop.f32.mrb[0].mxu0
    %v579 = vadd.f32 0.0, %v578
    %v580 = vpop.f32.mrb[0].mxu0
    %v581 = vadd.f32 0.0, %v580
    %582 = vmatprep.mubr.bf16.mxu0 0
    %583 = vmatmul.mubr.bf16.gmra.mrb[0].mxu0 %v385
    %v584 = vpop.f32.mrb[0].mxu0
    %v585 = vadd.f32 0.0, %v584
    %v586 = vpop.f32.mrb[0].mxu0
    %v587 = vadd.f32 0.0, %v586
    %v588 = vpop.f32.mrb[0].mxu0
    %v589 = vadd.f32 0.0, %v588
    %v590 = vpop.f32.mrb[0].mxu0
    %v591 = vadd.f32 0.0, %v590
    %592 = vmatprep.mubr.bf16.mxu0 0
    %593 = vmatmul.mubr.bf16.gmra.mrb[0].mxu0 %v388
    %v594 = vpop.f32.mrb[0].mxu0
    %v595 = vadd.f32 0.0, %v594
    %v596 = vpop.f32.mrb[0].mxu0
    %v597 = vadd.f32 0.0, %v596
    %v598 = vpop.f32.mrb[0].mxu0
    %v599 = vadd.f32 0.0, %v598
    %v600 = vpop.f32.mrb[0].mxu0
    %v601 = vadd.f32 0.0, %v600
    %602 = vdwg.mxu0
    %v603 = vsel %vm52, %v264, 0.0
    %v604 = vadd.f32 %v263, %v603
    %605 = vadd.xlane.f32.xlu0 %v604
    %v606 = vpop.xlane.xlu0 %605
    %v607 = vsel %vm52, %v266, 0.0
    %v608 = vadd.f32 %v265, %v607
    %609 = vadd.xlane.f32.xlu0 %v608
    %v610 = vpop.xlane.xlu0 %609
    %v611 = vsel %vm52, %v268, 0.0
    %v612 = vadd.f32 %v267, %v611
    %613 = vadd.xlane.f32.xlu0 %v612
    %v614 = vpop.xlane.xlu0 %613
    %v615 = vsel %vm52, %v270, 0.0
    %v616 = vadd.f32 %v269, %v615
    %617 = vadd.xlane.f32.xlu0 %v616
    %v618 = vpop.xlane.xlu0 %617
    %v619 = vsel %vm52, %v272, 0.0
    %v620 = vadd.f32 %v271, %v619
    %621 = vadd.xlane.f32.xlu0 %v620
    %v622 = vpop.xlane.xlu0 %621
    %v623 = vsel %vm52, %v274, 0.0
    %v624 = vadd.f32 %v273, %v623
    %625 = vadd.xlane.f32.xlu0 %v624
    %v626 = vpop.xlane.xlu0 %625
    %v627 = vmul.f32 %v606, 0.0051020407
    %v628 = vmul.f32 %v610, 0.0051020407
    %v629 = vmul.f32 %v614, 0.0051020407
    %v630 = vmul.f32 %v618, 0.0051020407
    %v631 = vmul.f32 %v622, 0.0051020407
    %v632 = vmul.f32 %v626, 0.0051020407
    %v634 = vsel %vm335, %v275, 0
    %v637 = vsel %vm335, %v276, 0
    %v640 = vsel %vm335, %v277, 0
    %v643 = vsel %vm335, %v278, 0
    %v646 = vsel %vm335, %v279, 0
    %v649 = vsel %vm335, %v280, 0
    %v652 = vsel %vm335, %v281, 0
    %v655 = vsel %vm335, %v282, 0
    %v658 = vsel %vm335, %v283, 0
    %v661 = vsel %vm335, %v284, 0
    %v664 = vsel %vm335, %v285, 0
    %v667 = vsel %vm335, %v286, 0
    %v670 = vsel %vm335, %v287, 0
    %v673 = vsel %vm335, %v288, 0
    %v676 = vsel %vm335, %v289, 0
    %v679 = vsel %vm335, %v290, 0
    %v682 = vsel %vm335, %v291, 0
    %v685 = vsel %vm335, %v292, 0
    %v688 = vsel %vm335, %v293, 0
    %v691 = vsel %vm335, %v294, 0
    %v694 = vsel %vm335, %v295, 0
    %v697 = vsel %vm335, %v296, 0
    %v700 = vsel %vm335, %v297, 0
    %v703 = vsel %vm335, %v298, 0
    %v706 = vsel %vm335, %v299, 0
    %v709 = vsel %vm335, %v300, 0
    %v712 = vsel %vm335, %v301, 0
    %v715 = vsel %vm335, %v302, 0
    %v718 = vsel %vm335, %v303, 0
    %v721 = vsel %vm335, %v304, 0
    %v724 = vsel %vm335, %v305, 0
    %v727 = vsel %vm335, %v306, 0
    %v730 = vsel %vm335, %v307, 0
    %v733 = vsel %vm335, %v308, 0
    %v736 = vsel %vm335, %v309, 0
    %v739 = vsel %vm335, %v310, 0
    %741 = vmatprep.subr.mxu0 0.0
    %742 = vmatpush1.msra.mxu0 %v627
    %743 = vmatprep.subr.mxu0 0.0
    %744 = vmatpush1.msra.mxu0 %v628
    %745 = vmatprep.subr.mxu0 0.0
    %746 = vmatpush1.msra.mxu0 %v629
    %747 = vmatprep.subr.mxu0 0.0
    %748 = vmatpush1.msra.mxu0 %v630
    %749 = vmatprep.subr.mxu0 0.0
    %750 = vmatpush1.msra.mxu0 %v631
    %751 = vmatprep.subr.mxu0 0.0
    %752 = vmatpush1.msra.mxu0 %v632
    %753 = vmatprep.subr.mxu0 0.0
    %754 = vmatpush1.msra.mxu0 0.0
    %755 = vmatprep.subr.mxu0 0.0
    %756 = vmatpush1.msra.mxu0 0.0
    %757 = vmatprep.subr.mxu0 0.0
    %758 = vmatpush1.msra.mxu0 0.0
    %759 = vmatprep.subr.mxu0 0.0
    %760 = vmatpush1.msra.mxu0 0.0
    %761 = vmatprep.subr.mxu0 0.0
    %762 = vmatpush1.msra.mxu0 0.0
    %763 = vmatprep.subr.mxu0 0.0
    %764 = vmatpush1.msra.mxu0 0.0
    %765 = vmatprep.subr.mxu0 0.0
    %766 = vmatpush1.msra.mxu0 0.0
    %767 = vmatprep.subr.mxu0 0.0
    %768 = vmatpush1.msra.mxu0 0.0
    %769 = vmatprep.subr.mxu0 0.0
    %770 = vmatpush1.msra.mxu0 0.0
    %771 = vmatprep.subr.mxu0 0.0
    %772 = vmatpush1.msra.mxu0 0.0
    %773 = vmatprep.subr.mxu0 0.0
    %774 = vmatpush1.msra.mxu0 0.0
    %775 = vmatprep.subr.mxu0 0.0
    %776 = vmatpush1.msra.mxu0 0.0
    %777 = vmatprep.subr.mxu0 0.0
    %778 = vmatpush1.msra.mxu0 0.0
    %779 = vmatprep.subr.mxu0 0.0
    %780 = vmatpush1.msra.mxu0 0.0
    %781 = vmatprep.subr.mxu0 0.0
    %782 = vmatpush1.msra.mxu0 0.0
    %783 = vmatprep.subr.mxu0 0.0
    %784 = vmatpush1.msra.mxu0 0.0
    %785 = vmatprep.subr.mxu0 0.0
    %786 = vmatpush1.msra.mxu0 0.0
    %787 = vmatprep.subr.mxu0 0.0
    %788 = vmatpush1.msra.mxu0 0.0
    %789 = vmatprep.subr.mxu0 0.0
    %790 = vmatpush1.msra.mxu0 0.0
    %791 = vmatprep.subr.mxu0 0.0
    %792 = vmatpush1.msra.mxu0 0.0
    %793 = vmatprep.subr.mxu0 0.0
    %794 = vmatpush1.msra.mxu0 0.0
    %795 = vmatprep.subr.mxu0 0.0
    %796 = vmatpush1.msra.mxu0 0.0
    %797 = vmatprep.subr.mxu0 0.0
    %798 = vmatpush1.msra.mxu0 0.0
    %799 = vmatprep.subr.mxu0 0.0
    %800 = vmatpush1.msra.mxu0 0.0
    %801 = vmatprep.subr.mxu0 0.0
    %802 = vmatpush1.msra.mxu0 0.0
    %803 = vmatprep.subr.mxu0 0.0
    %804 = vmatpush1.msra.mxu0 0.0
    %805 = vmatprep.mubr.f32.mxu0 0.0
    %806 = vmatmul.mubr.f32.gmra.mrb[0].mxu0 %v634
    %v807 = vpop.f32.mrb[0].mxu0
    %v808 = vadd.f32 0.0, %v807
    %v809 = vpop.f32.mrb[0].mxu0
    %810 = vmatprep.mubr.f32.mxu0 0.0
    %811 = vmatmul.mubr.f32.gmra.mrb[0].mxu0 %v637
    %v812 = vpop.f32.mrb[0].mxu0
    %v813 = vadd.f32 0.0, %v812
    %v814 = vpop.f32.mrb[0].mxu0
    %815 = vmatprep.mubr.f32.mxu0 0.0
    %816 = vmatmul.mubr.f32.gmra.mrb[0].mxu0 %v640
    %v817 = vpop.f32.mrb[0].mxu0
    %v818 = vadd.f32 0.0, %v817
    %v819 = vpop.f32.mrb[0].mxu0
    %820 = vmatprep.mubr.f32.mxu0 0.0
    %821 = vmatmul.mubr.f32.gmra.mrb[0].mxu0 %v643
    %v822 = vpop.f32.mrb[0].mxu0
    %v823 = vadd.f32 0.0, %v822
    %v824 = vpop.f32.mrb[0].mxu0
    %825 = vmatprep.mubr.f32.mxu0 0.0
    %826 = vmatmul.mubr.f32.gmra.mrb[0].mxu0 %v646
    %v827 = vpop.f32.mrb[0].mxu0
    %v828 = vadd.f32 0.0, %v827
    %v829 = vpop.f32.mrb[0].mxu0
    %830 = vmatprep.mubr.f32.mxu0 0.0
    %831 = vmatmul.mubr.f32.gmra.mrb[0].mxu0 %v649
    %v832 = vpop.f32.mrb[0].mxu0
    %v833 = vadd.f32 0.0, %v832
    %v834 = vpop.f32.mrb[0].mxu0
    %835 = vmatprep.mubr.f32.mxu0 0.0
    %836 = vmatmul.mubr.f32.gmra.mrb[0].mxu0 %v652
    %v837 = vpop.f32.mrb[0].mxu0
    %v838 = vadd.f32 0.0, %v837
    %v839 = vpop.f32.mrb[0].mxu0
    %840 = vmatprep.mubr.f32.mxu0 0.0
    %841 = vmatmul.mubr.f32.gmra.mrb[0].mxu0 %v655
    %v842 = vpop.f32.mrb[0].mxu0
    %v843 = vadd.f32 0.0, %v842
    %v844 = vpop.f32.mrb[0].mxu0
    %845 = vmatprep.mubr.f32.mxu0 0.0
    %846 = vmatmul.mubr.f32.gmra.mrb[0].mxu0 %v658
    %v847 = vpop.f32.mrb[0].mxu0
    %v848 = vadd.f32 0.0, %v847
    %v849 = vpop.f32.mrb[0].mxu0
    %850 = vmatprep.mubr.f32.mxu0 0.0
    %851 = vmatmul.mubr.f32.gmra.mrb[0].mxu0 %v661
    %v852 = vpop.f32.mrb[0].mxu0
    %v853 = vadd.f32 0.0, %v852
    %v854 = vpop.f32.mrb[0].mxu0
    %855 = vmatprep.mubr.f32.mxu0 0.0
    %856 = vmatmul.mubr.f32.gmra.mrb[0].mxu0 %v664
    %v857 = vpop.f32.mrb[0].mxu0
    %v858 = vadd.f32 0.0, %v857
    %v859 = vpop.f32.mrb[0].mxu0
    %860 = vmatprep.mubr.f32.mxu0 0.0
    %861 = vmatmul.mubr.f32.gmra.mrb[0].mxu0 %v667
    %v862 = vpop.f32.mrb[0].mxu0
    %v863 = vadd.f32 0.0, %v862
    %v864 = vpop.f32.mrb[0].mxu0
    %865 = vmatprep.mubr.f32.mxu0 0.0
    %866 = vmatmul.mubr.f32.gmra.mrb[0].mxu0 %v670
    %v867 = vpop.f32.mrb[0].mxu0
    %v868 = vadd.f32 0.0, %v867
    %v869 = vpop.f32.mrb[0].mxu0
    %870 = vmatprep.mubr.f32.mxu0 0.0
    %871 = vmatmul.mubr.f32.gmra.mrb[0].mxu0 %v673
    %v872 = vpop.f32.mrb[0].mxu0
    %v873 = vadd.f32 0.0, %v872
    %v874 = vpop.f32.mrb[0].mxu0
    %875 = vmatprep.mubr.f32.mxu0 0.0
    %876 = vmatmul.mubr.f32.gmra.mrb[0].mxu0 %v676
    %v877 = vpop.f32.mrb[0].mxu0
    %v878 = vadd.f32 0.0, %v877
    %v879 = vpop.f32.mrb[0].mxu0
    %880 = vmatprep.mubr.f32.mxu0 0.0
    %881 = vmatmul.mubr.f32.gmra.mrb[0].mxu0 %v679
    %v882 = vpop.f32.mrb[0].mxu0
    %v883 = vadd.f32 0.0, %v882
    %v884 = vpop.f32.mrb[0].mxu0
    %885 = vmatprep.mubr.f32.mxu0 0.0
    %886 = vmatmul.mubr.f32.gmra.mrb[0].mxu0 %v682
    %v887 = vpop.f32.mrb[0].mxu0
    %v888 = vadd.f32 0.0, %v887
    %v889 = vpop.f32.mrb[0].mxu0
    %890 = vmatprep.mubr.f32.mxu0 0.0
    %891 = vmatmul.mubr.f32.gmra.mrb[0].mxu0 %v685
    %v892 = vpop.f32.mrb[0].mxu0
    %v893 = vadd.f32 0.0, %v892
    %v894 = vpop.f32.mrb[0].mxu0
    %895 = vmatprep.mubr.f32.mxu0 0.0
    %896 = vmatmul.mubr.f32.gmra.mrb[0].mxu0 %v688
    %v897 = vpop.f32.mrb[0].mxu0
    %v898 = vadd.f32 0.0, %v897
    %v899 = vpop.f32.mrb[0].mxu0
    %900 = vmatprep.mubr.f32.mxu0 0.0
    %901 = vmatmul.mubr.f32.gmra.mrb[0].mxu0 %v691
    %v902 = vpop.f32.mrb[0].mxu0
    %v903 = vadd.f32 0.0, %v902
    %v904 = vpop.f32.mrb[0].mxu0
    %905 = vmatprep.mubr.f32.mxu0 0.0
    %906 = vmatmul.mubr.f32.gmra.mrb[0].mxu0 %v694
    %v907 = vpop.f32.mrb[0].mxu0
    %v908 = vadd.f32 0.0, %v907
    %v909 = vpop.f32.mrb[0].mxu0
    %910 = vmatprep.mubr.f32.mxu0 0.0
    %911 = vmatmul.mubr.f32.gmra.mrb[0].mxu0 %v697
    %v912 = vpop.f32.mrb[0].mxu0
    %v913 = vadd.f32 0.0, %v912
    %v914 = vpop.f32.mrb[0].mxu0
    %915 = vmatprep.mubr.f32.mxu0 0.0
    %916 = vmatmul.mubr.f32.gmra.mrb[0].mxu0 %v700
    %v917 = vpop.f32.mrb[0].mxu0
    %v918 = vadd.f32 0.0, %v917
    %v919 = vpop.f32.mrb[0].mxu0
    %920 = vmatprep.mubr.f32.mxu0 0.0
    %921 = vmatmul.mubr.f32.gmra.mrb[0].mxu0 %v703
    %v922 = vpop.f32.mrb[0].mxu0
    %v923 = vadd.f32 0.0, %v922
    %v924 = vpop.f32.mrb[0].mxu0
    %925 = vmatprep.mubr.f32.mxu0 0.0
    %926 = vmatmul.mubr.f32.gmra.mrb[0].mxu0 %v706
    %v927 = vpop.f32.mrb[0].mxu0
    %v928 = vadd.f32 0.0, %v927
    %v929 = vpop.f32.mrb[0].mxu0
    %930 = vmatprep.mubr.f32.mxu0 0.0
    %931 = vmatmul.mubr.f32.gmra.mrb[0].mxu0 %v709
    %v932 = vpop.f32.mrb[0].mxu0
    %v933 = vadd.f32 0.0, %v932
    %v934 = vpop.f32.mrb[0].mxu0
    %935 = vmatprep.mubr.f32.mxu0 0.0
    %936 = vmatmul.mubr.f32.gmra.mrb[0].mxu0 %v712
    %v937 = vpop.f32.mrb[0].mxu0
    %v938 = vadd.f32 0.0, %v937
    %v939 = vpop.f32.mrb[0].mxu0
    %940 = vmatprep.mubr.f32.mxu0 0.0
    %941 = vmatmul.mubr.f32.gmra.mrb[0].mxu0 %v715
    %v942 = vpop.f32.mrb[0].mxu0
    %v943 = vadd.f32 0.0, %v942
    %v944 = vpop.f32.mrb[0].mxu0
    %945 = vmatprep.mubr.f32.mxu0 0.0
    %946 = vmatmul.mubr.f32.gmra.mrb[0].mxu0 %v718
    %v947 = vpop.f32.mrb[0].mxu0
    %v948 = vadd.f32 0.0, %v947
    %v949 = vpop.f32.mrb[0].mxu0
    %950 = vmatprep.mubr.f32.mxu0 0.0
    %951 = vmatmul.mubr.f32.gmra.mrb[0].mxu0 %v721
    %v952 = vpop.f32.mrb[0].mxu0
    %v953 = vadd.f32 0.0, %v952
    %v954 = vpop.f32.mrb[0].mxu0
    %955 = vmatprep.mubr.f32.mxu0 0.0
    %956 = vmatmul.mubr.f32.gmra.mrb[0].mxu0 %v724
    %v957 = vpop.f32.mrb[0].mxu0
    %v958 = vadd.f32 0.0, %v957
    %v959 = vpop.f32.mrb[0].mxu0
    %960 = vmatprep.mubr.f32.mxu0 0.0
    %961 = vmatmul.mubr.f32.gmra.mrb[0].mxu0 %v727
    %v962 = vpop.f32.mrb[0].mxu0
    %v963 = vadd.f32 0.0, %v962
    %v964 = vpop.f32.mrb[0].mxu0
    %965 = vmatprep.mubr.f32.mxu0 0.0
    %966 = vmatmul.mubr.f32.gmra.mrb[0].mxu0 %v730
    %v967 = vpop.f32.mrb[0].mxu0
    %v968 = vadd.f32 0.0, %v967
    %v969 = vpop.f32.mrb[0].mxu0
    %970 = vmatprep.mubr.f32.mxu0 0.0
    %971 = vmatmul.mubr.f32.gmra.mrb[0].mxu0 %v733
    %v972 = vpop.f32.mrb[0].mxu0
    %v973 = vadd.f32 0.0, %v972
    %v974 = vpop.f32.mrb[0].mxu0
    %975 = vmatprep.mubr.f32.mxu0 0.0
    %976 = vmatmul.mubr.f32.gmra.mrb[0].mxu0 %v736
    %v977 = vpop.f32.mrb[0].mxu0
    %v978 = vadd.f32 0.0, %v977
    %v979 = vpop.f32.mrb[0].mxu0
    %980 = vmatprep.mubr.f32.mxu0 0.0
    %981 = vmatmul.mubr.f32.gmra.mrb[0].mxu0 %v739
    %v982 = vpop.f32.mrb[0].mxu0
    %v983 = vadd.f32 0.0, %v982
    %v984 = vpop.f32.mrb[0].mxu0
    %985 = vdwg.mxu0
    %v986 = vmul.f32 %v425, %v425
    %v987 = vmul.f32 %v427, %v427
    %v988 = vmul.f32 %v429, %v429
    %v989 = vmul.f32 %v431, %v431
    %v990 = vmul.f32 %v435, %v435
    %v991 = vmul.f32 %v437, %v437
    %v992 = vmul.f32 %v439, %v439
    %v993 = vmul.f32 %v441, %v441
    %v994 = vmul.f32 %v445, %v445
    %v995 = vmul.f32 %v447, %v447
    %v996 = vmul.f32 %v449, %v449
    %v997 = vmul.f32 %v451, %v451
    %v998 = vmul.f32 %v455, %v455
    %v999 = vmul.f32 %v457, %v457
    %v1000 = vmul.f32 %v459, %v459
    %v1001 = vmul.f32 %v461, %v461
    %v1002 = vmul.f32 %v465, %v465
    %v1003 = vmul.f32 %v467, %v467
    %v1004 = vmul.f32 %v469, %v469
    %v1005 = vmul.f32 %v471, %v471
    %v1006 = vmul.f32 %v475, %v475
    %v1007 = vmul.f32 %v477, %v477
    %v1008 = vmul.f32 %v479, %v479
    %v1009 = vmul.f32 %v481, %v481
    %v1010 = vmul.f32 %v485, %v485
    %v1011 = vmul.f32 %v487, %v487
    %v1012 = vmul.f32 %v489, %v489
    %v1013 = vmul.f32 %v491, %v491
    %v1014 = vmul.f32 %v495, %v495
    %v1015 = vmul.f32 %v497, %v497
    %v1016 = vmul.f32 %v499, %v499
    %v1017 = vmul.f32 %v501, %v501
    %v1018 = vmul.f32 %v505, %v505
    %v1019 = vmul.f32 %v507, %v507
    %v1020 = vmul.f32 %v509, %v509
    %v1021 = vmul.f32 %v511, %v511
    %v1022 = vmul.f32 %v515, %v515
    %v1023 = vmul.f32 %v517, %v517
    %v1024 = vmul.f32 %v519, %v519
    %v1025 = vmul.f32 %v521, %v521
    %v1026 = vmul.f32 %v525, %v525
    %v1027 = vmul.f32 %v527, %v527
    %v1028 = vmul.f32 %v529, %v529
    %v1029 = vmul.f32 %v531, %v531
    %v1030 = vmul.f32 %v535, %v535
    %v1031 = vmul.f32 %v537, %v537
    %v1032 = vmul.f32 %v539, %v539
    %v1033 = vmul.f32 %v541, %v541
    %v1034 = vmul.f32 %v545, %v545
    %v1035 = vmul.f32 %v547, %v547
    %v1036 = vmul.f32 %v549, %v549
    %v1037 = vmul.f32 %v551, %v551
    %v1038 = vmul.f32 %v555, %v555
    %v1039 = vmul.f32 %v557, %v557
    %v1040 = vmul.f32 %v559, %v559
    %v1041 = vmul.f32 %v561, %v561
    %v1042 = vmul.f32 %v565, %v565
    %v1043 = vmul.f32 %v567, %v567
    %v1044 = vmul.f32 %v569, %v569
    %v1045 = vmul.f32 %v571, %v571
    %v1046 = vmul.f32 %v575, %v575
    %v1047 = vmul.f32 %v577, %v577
    %v1048 = vmul.f32 %v579, %v579
    %v1049 = vmul.f32 %v581, %v581
    %v1050 = vmul.f32 %v585, %v585
    %v1051 = vmul.f32 %v587, %v587
    %v1052 = vmul.f32 %v589, %v589
    %v1053 = vmul.f32 %v591, %v591
    %v1054 = vmul.f32 %v595, %v595
    %v1055 = vmul.f32 %v597, %v597
    %v1056 = vmul.f32 %v599, %v599
    %v1057 = vmul.f32 %v601, %v601
    %v1058 = vsel %vm52, %v987, 0.0
    %v1059 = vadd.f32 %v986, %v1058
    %1060 = vadd.xlane.f32.xlu0 %v1059
    %v1061 = vpop.xlane.xlu0 %1060
    %v1062 = vsel %vm52, %v989, 0.0
    %v1063 = vadd.f32 %v988, %v1062
    %1064 = vadd.xlane.f32.xlu0 %v1063
    %v1065 = vpop.xlane.xlu0 %1064
    %v1066 = vsel %vm52, %v991, 0.0
    %v1067 = vadd.f32 %v990, %v1066
    %1068 = vadd.xlane.f32.xlu0 %v1067
    %v1069 = vpop.xlane.xlu0 %1068
    %v1070 = vsel %vm52, %v993, 0.0
    %v1071 = vadd.f32 %v992, %v1070
    %1072 = vadd.xlane.f32.xlu0 %v1071
    %v1073 = vpop.xlane.xlu0 %1072
    %v1074 = vsel %vm52, %v995, 0.0
    %v1075 = vadd.f32 %v994, %v1074
    %1076 = vadd.xlane.f32.xlu0 %v1075
    %v1077 = vpop.xlane.xlu0 %1076
    %v1078 = vsel %vm52, %v997, 0.0
    %v1079 = vadd.f32 %v996, %v1078
    %1080 = vadd.xlane.f32.xlu0 %v1079
    %v1081 = vpop.xlane.xlu0 %1080
    %v1082 = vsel %vm52, %v999, 0.0
    %v1083 = vadd.f32 %v998, %v1082
    %1084 = vadd.xlane.f32.xlu0 %v1083
    %v1085 = vpop.xlane.xlu0 %1084
    %v1086 = vsel %vm52, %v1001, 0.0
    %v1087 = vadd.f32 %v1000, %v1086
    %1088 = vadd.xlane.f32.xlu0 %v1087
    %v1089 = vpop.xlane.xlu0 %1088
    %v1090 = vsel %vm52, %v1003, 0.0
    %v1091 = vadd.f32 %v1002, %v1090
    %1092 = vadd.xlane.f32.xlu0 %v1091
    %v1093 = vpop.xlane.xlu0 %1092
    %v1094 = vsel %vm52, %v1005, 0.0
    %v1095 = vadd.f32 %v1004, %v1094
    %1096 = vadd.xlane.f32.xlu0 %v1095
    %v1097 = vpop.xlane.xlu0 %1096
    %v1098 = vsel %vm52, %v1007, 0.0
    %v1099 = vadd.f32 %v1006, %v1098
    %1100 = vadd.xlane.f32.xlu0 %v1099
    %v1101 = vpop.xlane.xlu0 %1100
    %v1102 = vsel %vm52, %v1009, 0.0
    %v1103 = vadd.f32 %v1008, %v1102
    %1104 = vadd.xlane.f32.xlu0 %v1103
    %v1105 = vpop.xlane.xlu0 %1104
    %v1106 = vsel %vm52, %v1011, 0.0
    %v1107 = vadd.f32 %v1010, %v1106
    %1108 = vadd.xlane.f32.xlu0 %v1107
    %v1109 = vpop.xlane.xlu0 %1108
    %v1110 = vsel %vm52, %v1013, 0.0
    %v1111 = vadd.f32 %v1012, %v1110
    %1112 = vadd.xlane.f32.xlu0 %v1111
    %v1113 = vpop.xlane.xlu0 %1112
    %v1114 = vsel %vm52, %v1015, 0.0
    %v1115 = vadd.f32 %v1014, %v1114
    %1116 = vadd.xlane.f32.xlu0 %v1115
    %v1117 = vpop.xlane.xlu0 %1116
    %v1118 = vsel %vm52, %v1017, 0.0
    %v1119 = vadd.f32 %v1016, %v1118
    %1120 = vadd.xlane.f32.xlu0 %v1119
    %v1121 = vpop.xlane.xlu0 %1120
    %v1122 = vsel %vm52, %v1019, 0.0
    %v1123 = vadd.f32 %v1018, %v1122
    %1124 = vadd.xlane.f32.xlu0 %v1123
    %v1125 = vpop.xlane.xlu0 %1124
    %v1126 = vsel %vm52, %v1021, 0.0
    %v1127 = vadd.f32 %v1020, %v1126
    %1128 = vadd.xlane.f32.xlu0 %v1127
    %v1129 = vpop.xlane.xlu0 %1128
    %v1130 = vsel %vm52, %v1023, 0.0
    %v1131 = vadd.f32 %v1022, %v1130
    %1132 = vadd.xlane.f32.xlu0 %v1131
    %v1133 = vpop.xlane.xlu0 %1132
    %v1134 = vsel %vm52, %v1025, 0.0
    %v1135 = vadd.f32 %v1024, %v1134
    %1136 = vadd.xlane.f32.xlu0 %v1135
    %v1137 = vpop.xlane.xlu0 %1136
    %v1138 = vsel %vm52, %v1027, 0.0
    %v1139 = vadd.f32 %v1026, %v1138
    %1140 = vadd.xlane.f32.xlu0 %v1139
    %v1141 = vpop.xlane.xlu0 %1140
    %v1142 = vsel %vm52, %v1029, 0.0
    %v1143 = vadd.f32 %v1028, %v1142
    %1144 = vadd.xlane.f32.xlu0 %v1143
    %v1145 = vpop.xlane.xlu0 %1144
    %v1146 = vsel %vm52, %v1031, 0.0
    %v1147 = vadd.f32 %v1030, %v1146
    %1148 = vadd.xlane.f32.xlu0 %v1147
    %v1149 = vpop.xlane.xlu0 %1148
    %v1150 = vsel %vm52, %v1033, 0.0
    %v1151 = vadd.f32 %v1032, %v1150
    %1152 = vadd.xlane.f32.xlu0 %v1151
    %v1153 = vpop.xlane.xlu0 %1152
    %v1154 = vsel %vm52, %v1035, 0.0
    %v1155 = vadd.f32 %v1034, %v1154
    %1156 = vadd.xlane.f32.xlu0 %v1155
    %v1157 = vpop.xlane.xlu0 %1156
    %v1158 = vsel %vm52, %v1037, 0.0
    %v1159 = vadd.f32 %v1036, %v1158
    %1160 = vadd.xlane.f32.xlu0 %v1159
    %v1161 = vpop.xlane.xlu0 %1160
    %v1162 = vsel %vm52, %v1039, 0.0
    %v1163 = vadd.f32 %v1038, %v1162
    %1164 = vadd.xlane.f32.xlu0 %v1163
    %v1165 = vpop.xlane.xlu0 %1164
    %v1166 = vsel %vm52, %v1041, 0.0
    %v1167 = vadd.f32 %v1040, %v1166
    %1168 = vadd.xlane.f32.xlu0 %v1167
    %v1169 = vpop.xlane.xlu0 %1168
    %v1170 = vsel %vm52, %v1043, 0.0
    %v1171 = vadd.f32 %v1042, %v1170
    %1172 = vadd.xlane.f32.xlu0 %v1171
    %v1173 = vpop.xlane.xlu0 %1172
    %v1174 = vsel %vm52, %v1045, 0.0
    %v1175 = vadd.f32 %v1044, %v1174
    %1176 = vadd.xlane.f32.xlu0 %v1175
    %v1177 = vpop.xlane.xlu0 %1176
    %v1178 = vsel %vm52, %v1047, 0.0
    %v1179 = vadd.f32 %v1046, %v1178
    %1180 = vadd.xlane.f32.xlu0 %v1179
    %v1181 = vpop.xlane.xlu0 %1180
    %v1182 = vsel %vm52, %v1049, 0.0
    %v1183 = vadd.f32 %v1048, %v1182
    %1184 = vadd.xlane.f32.xlu0 %v1183
    %v1185 = vpop.xlane.xlu0 %1184
    %v1186 = vsel %vm52, %v1051, 0.0
    %v1187 = vadd.f32 %v1050, %v1186
    %1188 = vadd.xlane.f32.xlu0 %v1187
    %v1189 = vpop.xlane.xlu0 %1188
    %v1190 = vsel %vm52, %v1053, 0.0
    %v1191 = vadd.f32 %v1052, %v1190
    %1192 = vadd.xlane.f32.xlu0 %v1191
    %v1193 = vpop.xlane.xlu0 %1192
    %v1194 = vsel %vm52, %v1055, 0.0
    %v1195 = vadd.f32 %v1054, %v1194
    %1196 = vadd.xlane.f32.xlu0 %v1195
    %v1197 = vpop.xlane.xlu0 %1196
    %v1198 = vsel %vm52, %v1057, 0.0
    %v1199 = vadd.f32 %v1056, %v1198
    %1200 = vadd.xlane.f32.xlu0 %v1199
    %v1201 = vpop.xlane.xlu0 %1200
    %v1202 = vmul.f32 %v1061, 0.0051020407
    %v1203 = vmul.f32 %v1065, 0.0051020407
    %v1204 = vmul.f32 %v1069, 0.0051020407
    %v1205 = vmul.f32 %v1073, 0.0051020407
    %v1206 = vmul.f32 %v1077, 0.0051020407
    %v1207 = vmul.f32 %v1081, 0.0051020407
    %v1208 = vmul.f32 %v1085, 0.0051020407
    %v1209 = vmul.f32 %v1089, 0.0051020407
    %v1210 = vmul.f32 %v1093, 0.0051020407
    %v1211 = vmul.f32 %v1097, 0.0051020407
    %v1212 = vmul.f32 %v1101, 0.0051020407
    %v1213 = vmul.f32 %v1105, 0.0051020407
    %v1214 = vmul.f32 %v1109, 0.0051020407
    %v1215 = vmul.f32 %v1113, 0.0051020407
    %v1216 = vmul.f32 %v1117, 0.0051020407
    %v1217 = vmul.f32 %v1121, 0.0051020407
    %v1218 = vmul.f32 %v1125, 0.0051020407
    %v1219 = vmul.f32 %v1129, 0.0051020407
    %v1220 = vmul.f32 %v1133, 0.0051020407
    %v1221 = vmul.f32 %v1137, 0.0051020407
    %v1222 = vmul.f32 %v1141, 0.0051020407
    %v1223 = vmul.f32 %v1145, 0.0051020407
    %v1224 = vmul.f32 %v1149, 0.0051020407
    %v1225 = vmul.f32 %v1153, 0.0051020407
    %v1226 = vmul.f32 %v1157, 0.0051020407
    %v1227 = vmul.f32 %v1161, 0.0051020407
    %v1228 = vmul.f32 %v1165, 0.0051020407
    %v1229 = vmul.f32 %v1169, 0.0051020407
    %v1230 = vmul.f32 %v1173, 0.0051020407
    %v1231 = vmul.f32 %v1177, 0.0051020407
    %v1232 = vmul.f32 %v1181, 0.0051020407
    %v1233 = vmul.f32 %v1185, 0.0051020407
    %v1234 = vmul.f32 %v1189, 0.0051020407
    %v1235 = vmul.f32 %v1193, 0.0051020407
    %v1236 = vmul.f32 %v1197, 0.0051020407
    %v1237 = vmul.f32 %v1201, 0.0051020407
    %v1238 = vmul.f32 %v808, %v808
    %v1239 = vmul.f32 %v813, %v813
    %v1240 = vmul.f32 %v818, %v818
    %v1241 = vmul.f32 %v823, %v823
    %v1242 = vmul.f32 %v828, %v828
    %v1243 = vmul.f32 %v833, %v833
    %v1244 = vmul.f32 %v838, %v838
    %v1245 = vmul.f32 %v843, %v843
    %v1246 = vmul.f32 %v848, %v848
    %v1247 = vmul.f32 %v853, %v853
    %v1248 = vmul.f32 %v858, %v858
    %v1249 = vmul.f32 %v863, %v863
    %v1250 = vmul.f32 %v868, %v868
    %v1251 = vmul.f32 %v873, %v873
    %v1252 = vmul.f32 %v878, %v878
    %v1253 = vmul.f32 %v883, %v883
    %v1254 = vmul.f32 %v888, %v888
    %v1255 = vmul.f32 %v893, %v893
    %v1256 = vmul.f32 %v898, %v898
    %v1257 = vmul.f32 %v903, %v903
    %v1258 = vmul.f32 %v908, %v908
    %v1259 = vmul.f32 %v913, %v913
    %v1260 = vmul.f32 %v918, %v918
    %v1261 = vmul.f32 %v923, %v923
    %v1262 = vmul.f32 %v928, %v928
    %v1263 = vmul.f32 %v933, %v933
    %v1264 = vmul.f32 %v938, %v938
    %v1265 = vmul.f32 %v943, %v943
    %v1266 = vmul.f32 %v948, %v948
    %v1267 = vmul.f32 %v953, %v953
    %v1268 = vmul.f32 %v958, %v958
    %v1269 = vmul.f32 %v963, %v963
    %v1270 = vmul.f32 %v968, %v968
    %v1271 = vmul.f32 %v973, %v973
    %v1272 = vmul.f32 %v978, %v978
    %v1273 = vmul.f32 %v983, %v983
    %v1274 = vsub.f32 %v1202, %v1238
    %v1275 = vsub.f32 %v1203, %v1239
    %v1276 = vsub.f32 %v1204, %v1240
    %v1277 = vsub.f32 %v1205, %v1241
    %v1278 = vsub.f32 %v1206, %v1242
    %v1279 = vsub.f32 %v1207, %v1243
    %v1280 = vsub.f32 %v1208, %v1244
    %v1281 = vsub.f32 %v1209, %v1245
    %v1282 = vsub.f32 %v1210, %v1246
    %v1283 = vsub.f32 %v1211, %v1247
    %v1284 = vsub.f32 %v1212, %v1248
    %v1285 = vsub.f32 %v1213, %v1249
    %v1286 = vsub.f32 %v1214, %v1250
    %v1287 = vsub.f32 %v1215, %v1251
    %v1288 = vsub.f32 %v1216, %v1252
    %v1289 = vsub.f32 %v1217, %v1253
    %v1290 = vsub.f32 %v1218, %v1254
    %v1291 = vsub.f32 %v1219, %v1255
    %v1292 = vsub.f32 %v1220, %v1256
    %v1293 = vsub.f32 %v1221, %v1257
    %v1294 = vsub.f32 %v1222, %v1258
    %v1295 = vsub.f32 %v1223, %v1259
    %v1296 = vsub.f32 %v1224, %v1260
    %v1297 = vsub.f32 %v1225, %v1261
    %v1298 = vsub.f32 %v1226, %v1262
    %v1299 = vsub.f32 %v1227, %v1263
    %v1300 = vsub.f32 %v1228, %v1264
    %v1301 = vsub.f32 %v1229, %v1265
    %v1302 = vsub.f32 %v1230, %v1266
    %v1303 = vsub.f32 %v1231, %v1267
    %v1304 = vsub.f32 %v1232, %v1268
    %v1305 = vsub.f32 %v1233, %v1269
    %v1306 = vsub.f32 %v1234, %v1270
    %v1307 = vsub.f32 %v1235, %v1271
    %v1308 = vsub.f32 %v1236, %v1272
    %v1309 = vsub.f32 %v1237, %v1273
    %v1310 = vld [vmem:[%s5] sm:$0xff]
    %v1311 = vld [vmem:[%s5 + $0x8] sm:$0xff]
    %v1312 = vld [vmem:[%s5 + $0x10] sm:$0xff]
    %v1313 = vld [vmem:[%s5 + $0x18] sm:$0xff]
    %v1314 = vld [vmem:[%s5 + $0x20] sm:$0xff]
    %v1315 = vld [vmem:[%s5 + $0x28] sm:$0xff]
    %v1316 = vld [vmem:[%s5 + $0x30] sm:$0xff]
    %v1317 = vld [vmem:[%s5 + $0x38] sm:$0xff]
    %v1318 = vld [vmem:[%s5 + $0x40] sm:$0xff]
    %v1319 = vld [vmem:[%s5 + $0x48] sm:$0xff]
    %v1320 = vld [vmem:[%s5 + $0x50] sm:$0xff]
    %v1321 = vld [vmem:[%s5 + $0x58] sm:$0xff]
    %v1322 = vld [vmem:[%s5 + $0x60] sm:$0xff]
    %v1323 = vld [vmem:[%s5 + $0x68] sm:$0xff]
    %v1324 = vld [vmem:[%s5 + $0x70] sm:$0xff]
    %v1325 = vld [vmem:[%s5 + $0x78] sm:$0xff]
    %v1326 = vld [vmem:[%s5 + $0x80] sm:$0xff]
    %v1327 = vld [vmem:[%s5 + $0x88] sm:$0xff]
    %v1328 = vld [vmem:[%s5 + $0x90] sm:$0xff]
    %v1329 = vld [vmem:[%s5 + $0x98] sm:$0xff]
    %v1330 = vld [vmem:[%s5 + $0xa0] sm:$0xff]
    %v1331 = vld [vmem:[%s5 + $0xa8] sm:$0xff]
    %v1332 = vld [vmem:[%s5 + $0xb0] sm:$0xff]
    %v1333 = vld [vmem:[%s5 + $0xb8] sm:$0xff]
    %v1334 = vld [vmem:[%s5 + $0xc0] sm:$0xff]
    %v1335 = vld [vmem:[%s5 + $0xc8] sm:$0xff]
    %v1336 = vld [vmem:[%s5 + $0xd0] sm:$0xff]
    %v1337 = vld [vmem:[%s5 + $0xd8] sm:$0xff]
    %v1338 = vld [vmem:[%s5 + $0xe0] sm:$0xff]
    %v1339 = vld [vmem:[%s5 + $0xe8] sm:$0xff]
    %v1340 = vld [vmem:[%s5 + $0xf0] sm:$0xff]
    %v1341 = vld [vmem:[%s5 + $0xf8] sm:$0xff]
    %v1342 = vld [vmem:[%s5 + $0x100] sm:$0xff]
    %v1343 = vld [vmem:[%s5 + $0x108] sm:$0xff]
    %v1344 = vld [vmem:[%s5 + $0x110] sm:$0xff]
    %v1345 = vld [vmem:[%s5 + $0x118] sm:$0xff]
    %v1346 = vadd.f32 %v1274, 0.001
    %v1347 = vadd.f32 %v1275, 0.001
    %v1348 = vadd.f32 %v1276, 0.001
    %v1349 = vadd.f32 %v1277, 0.001
    %v1350 = vadd.f32 %v1278, 0.001
    %v1351 = vadd.f32 %v1279, 0.001
    %v1352 = vadd.f32 %v1280, 0.001
    %v1353 = vadd.f32 %v1281, 0.001
    %v1354 = vadd.f32 %v1282, 0.001
    %v1355 = vadd.f32 %v1283, 0.001
    %v1356 = vadd.f32 %v1284, 0.001
    %v1357 = vadd.f32 %v1285, 0.001
    %v1358 = vadd.f32 %v1286, 0.001
    %v1359 = vadd.f32 %v1287, 0.001
    %v1360 = vadd.f32 %v1288, 0.001
    %v1361 = vadd.f32 %v1289, 0.001
    %v1362 = vadd.f32 %v1290, 0.001
    %v1363 = vadd.f32 %v1291, 0.001
    %v1364 = vadd.f32 %v1292, 0.001
    %v1365 = vadd.f32 %v1293, 0.001
    %v1366 = vadd.f32 %v1294, 0.001
    %v1367 = vadd.f32 %v1295, 0.001
    %v1368 = vadd.f32 %v1296, 0.001
    %v1369 = vadd.f32 %v1297, 0.001
    %v1370 = vadd.f32 %v1298, 0.001
    %v1371 = vadd.f32 %v1299, 0.001
    %v1372 = vadd.f32 %v1300, 0.001
    %v1373 = vadd.f32 %v1301, 0.001
    %v1374 = vadd.f32 %v1302, 0.001
    %v1375 = vadd.f32 %v1303, 0.001
    %v1376 = vadd.f32 %v1304, 0.001
    %v1377 = vadd.f32 %v1305, 0.001
    %v1378 = vadd.f32 %v1306, 0.001
    %v1379 = vadd.f32 %v1307, 0.001
    %v1380 = vadd.f32 %v1308, 0.001
    %v1381 = vadd.f32 %v1309, 0.001
    %v1382 = vrsqrt.pop %v1346
    %v1383 = vrsqrt.pop %v1347
    %v1384 = vrsqrt.pop %v1348
    %v1385 = vrsqrt.pop %v1349
    %v1386 = vrsqrt.pop %v1350
    %v1387 = vrsqrt.pop %v1351
    %v1388 = vrsqrt.pop %v1352
    %v1389 = vrsqrt.pop %v1353
    %v1390 = vrsqrt.pop %v1354
    %v1391 = vrsqrt.pop %v1355
    %v1392 = vrsqrt.pop %v1356
    %v1393 = vrsqrt.pop %v1357
    %v1394 = vrsqrt.pop %v1358
    %v1395 = vrsqrt.pop %v1359
    %v1396 = vrsqrt.pop %v1360
    %v1397 = vrsqrt.pop %v1361
    %v1398 = vrsqrt.pop %v1362
    %v1399 = vrsqrt.pop %v1363
    %v1400 = vrsqrt.pop %v1364
    %v1401 = vrsqrt.pop %v1365
    %v1402 = vrsqrt.pop %v1366
    %v1403 = vrsqrt.pop %v1367
    %v1404 = vrsqrt.pop %v1368
    %v1405 = vrsqrt.pop %v1369
    %v1406 = vrsqrt.pop %v1370
    %v1407 = vrsqrt.pop %v1371
    %v1408 = vrsqrt.pop %v1372
    %v1409 = vrsqrt.pop %v1373
    %v1410 = vrsqrt.pop %v1374
    %v1411 = vrsqrt.pop %v1375
    %v1412 = vrsqrt.pop %v1376
    %v1413 = vrsqrt.pop %v1377
    %v1414 = vrsqrt.pop %v1378
    %v1415 = vrsqrt.pop %v1379
    %v1416 = vrsqrt.pop %v1380
    %v1417 = vrsqrt.pop %v1381
    %v1418 = vmul.f32 %v1310, %v1382
    %v1419 = vmul.f32 %v1311, %v1383
    %v1420 = vmul.f32 %v1312, %v1384
    %v1421 = vmul.f32 %v1313, %v1385
    %v1422 = vmul.f32 %v1314, %v1386
    %v1423 = vmul.f32 %v1315, %v1387
    %v1424 = vmul.f32 %v1316, %v1388
    %v1425 = vmul.f32 %v1317, %v1389
    %v1426 = vmul.f32 %v1318, %v1390
    %v1427 = vmul.f32 %v1319, %v1391
    %v1428 = vmul.f32 %v1320, %v1392
    %v1429 = vmul.f32 %v1321, %v1393
    %v1430 = vmul.f32 %v1322, %v1394
    %v1431 = vmul.f32 %v1323, %v1395
    %v1432 = vmul.f32 %v1324, %v1396
    %v1433 = vmul.f32 %v1325, %v1397
    %v1434 = vmul.f32 %v1326, %v1398
    %v1435 = vmul.f32 %v1327, %v1399
    %v1436 = vmul.f32 %v1328, %v1400
    %v1437 = vmul.f32 %v1329, %v1401
    %v1438 = vmul.f32 %v1330, %v1402
    %v1439 = vmul.f32 %v1331, %v1403
    %v1440 = vmul.f32 %v1332, %v1404
    %v1441 = vmul.f32 %v1333, %v1405
    %v1442 = vmul.f32 %v1334, %v1406
    %v1443 = vmul.f32 %v1335, %v1407
    %v1444 = vmul.f32 %v1336, %v1408
    %v1445 = vmul.f32 %v1337, %v1409
    %v1446 = vmul.f32 %v1338, %v1410
    %v1447 = vmul.f32 %v1339, %v1411
    %v1448 = vmul.f32 %v1340, %v1412
    %v1449 = vmul.f32 %v1341, %v1413
    %v1450 = vmul.f32 %v1342, %v1414
    %v1451 = vmul.f32 %v1343, %v1415
    %v1452 = vmul.f32 %v1344, %v1416
    %v1453 = vmul.f32 %v1345, %v1417
    %v1454 = vld [vmem:[%s6] sm:$0xff]
    %v1455 = vld [vmem:[%s6 + $0x8] sm:$0xff]
    %v1456 = vld [vmem:[%s6 + $0x10] sm:$0xff]
    %v1457 = vld [vmem:[%s6 + $0x18] sm:$0xff]
    %v1458 = vld [vmem:[%s6 + $0x20] sm:$0xff]
    %v1459 = vld [vmem:[%s6 + $0x28] sm:$0xff]
    %v1460 = vld [vmem:[%s6 + $0x30] sm:$0xff]
    %v1461 = vld [vmem:[%s6 + $0x38] sm:$0xff]
    %v1462 = vld [vmem:[%s6 + $0x40] sm:$0xff]
    %v1463 = vld [vmem:[%s6 + $0x48] sm:$0xff]
    %v1464 = vld [vmem:[%s6 + $0x50] sm:$0xff]
    %v1465 = vld [vmem:[%s6 + $0x58] sm:$0xff]
    %v1466 = vld [vmem:[%s6 + $0x60] sm:$0xff]
    %v1467 = vld [vmem:[%s6 + $0x68] sm:$0xff]
    %v1468 = vld [vmem:[%s6 + $0x70] sm:$0xff]
    %v1469 = vld [vmem:[%s6 + $0x78] sm:$0xff]
    %v1470 = vld [vmem:[%s6 + $0x80] sm:$0xff]
    %v1471 = vld [vmem:[%s6 + $0x88] sm:$0xff]
    %v1472 = vld [vmem:[%s6 + $0x90] sm:$0xff]
    %v1473 = vld [vmem:[%s6 + $0x98] sm:$0xff]
    %v1474 = vld [vmem:[%s6 + $0xa0] sm:$0xff]
    %v1475 = vld [vmem:[%s6 + $0xa8] sm:$0xff]
    %v1476 = vld [vmem:[%s6 + $0xb0] sm:$0xff]
    %v1477 = vld [vmem:[%s6 + $0xb8] sm:$0xff]
    %v1478 = vld [vmem:[%s6 + $0xc0] sm:$0xff]
    %v1479 = vld [vmem:[%s6 + $0xc8] sm:$0xff]
    %v1480 = vld [vmem:[%s6 + $0xd0] sm:$0xff]
    %v1481 = vld [vmem:[%s6 + $0xd8] sm:$0xff]
    %v1482 = vld [vmem:[%s6 + $0xe0] sm:$0xff]
    %v1483 = vld [vmem:[%s6 + $0xe8] sm:$0xff]
    %v1484 = vld [vmem:[%s6 + $0xf0] sm:$0xff]
    %v1485 = vld [vmem:[%s6 + $0xf8] sm:$0xff]
    %v1486 = vld [vmem:[%s6 + $0x100] sm:$0xff]
    %v1487 = vld [vmem:[%s6 + $0x108] sm:$0xff]
    %v1488 = vld [vmem:[%s6 + $0x110] sm:$0xff]
    %v1489 = vld [vmem:[%s6 + $0x118] sm:$0xff]
    %v1490 = vmul.f32 %v808, %v1418
    %v1491 = vmul.f32 %v813, %v1419
    %v1492 = vmul.f32 %v818, %v1420
    %v1493 = vmul.f32 %v823, %v1421
    %v1494 = vmul.f32 %v828, %v1422
    %v1495 = vmul.f32 %v833, %v1423
    %v1496 = vmul.f32 %v838, %v1424
    %v1497 = vmul.f32 %v843, %v1425
    %v1498 = vmul.f32 %v848, %v1426
    %v1499 = vmul.f32 %v853, %v1427
    %v1500 = vmul.f32 %v858, %v1428
    %v1501 = vmul.f32 %v863, %v1429
    %v1502 = vmul.f32 %v868, %v1430
    %v1503 = vmul.f32 %v873, %v1431
    %v1504 = vmul.f32 %v878, %v1432
    %v1505 = vmul.f32 %v883, %v1433
    %v1506 = vmul.f32 %v888, %v1434
    %v1507 = vmul.f32 %v893, %v1435
    %v1508 = vmul.f32 %v898, %v1436
    %v1509 = vmul.f32 %v903, %v1437
    %v1510 = vmul.f32 %v908, %v1438
    %v1511 = vmul.f32 %v913, %v1439
    %v1512 = vmul.f32 %v918, %v1440
    %v1513 = vmul.f32 %v923, %v1441
    %v1514 = vmul.f32 %v928, %v1442
    %v1515 = vmul.f32 %v933, %v1443
    %v1516 = vmul.f32 %v938, %v1444
    %v1517 = vmul.f32 %v943, %v1445
    %v1518 = vmul.f32 %v948, %v1446
    %v1519 = vmul.f32 %v953, %v1447
    %v1520 = vmul.f32 %v958, %v1448
    %v1521 = vmul.f32 %v963, %v1449
    %v1522 = vmul.f32 %v968, %v1450
    %v1523 = vmul.f32 %v973, %v1451
    %v1524 = vmul.f32 %v978, %v1452
    %v1525 = vmul.f32 %v983, %v1453
    %v1526 = vsub.f32 %v1454, %v1490
    %v1527 = vsub.f32 %v1455, %v1491
    %v1528 = vsub.f32 %v1456, %v1492
    %v1529 = vsub.f32 %v1457, %v1493
    %v1530 = vsub.f32 %v1458, %v1494
    %v1531 = vsub.f32 %v1459, %v1495
    %v1532 = vsub.f32 %v1460, %v1496
    %v1533 = vsub.f32 %v1461, %v1497
    %v1534 = vsub.f32 %v1462, %v1498
    %v1535 = vsub.f32 %v1463, %v1499
    %v1536 = vsub.f32 %v1464, %v1500
    %v1537 = vsub.f32 %v1465, %v1501
    %v1538 = vsub.f32 %v1466, %v1502
    %v1539 = vsub.f32 %v1467, %v1503
    %v1540 = vsub.f32 %v1468, %v1504
    %v1541 = vsub.f32 %v1469, %v1505
    %v1542 = vsub.f32 %v1470, %v1506
    %v1543 = vsub.f32 %v1471, %v1507
    %v1544 = vsub.f32 %v1472, %v1508
    %v1545 = vsub.f32 %v1473, %v1509
    %v1546 = vsub.f32 %v1474, %v1510
    %v1547 = vsub.f32 %v1475, %v1511
    %v1548 = vsub.f32 %v1476, %v1512
    %v1549 = vsub.f32 %v1477, %v1513
    %v1550 = vsub.f32 %v1478, %v1514
    %v1551 = vsub.f32 %v1479, %v1515
    %v1552 = vsub.f32 %v1480, %v1516
    %v1553 = vsub.f32 %v1481, %v1517
    %v1554 = vsub.f32 %v1482, %v1518
    %v1555 = vsub.f32 %v1483, %v1519
    %v1556 = vsub.f32 %v1484, %v1520
    %v1557 = vsub.f32 %v1485, %v1521
    %v1558 = vsub.f32 %v1486, %v1522
    %v1559 = vsub.f32 %v1487, %v1523
    %v1560 = vsub.f32 %v1488, %v1524
    %v1561 = vsub.f32 %v1489, %v1525
    %1563 = vset.pattern.permute.xlu0 0
    %1564 = vperm.xlu0 %1563, %v1418
    %v1565 = vpop.permute.xlu0 %1564
    %1568 = vset.pattern.permute.xlu0 0
    %1569 = vperm.xlu0 %1568, %v1419
    %v1570 = vpop.permute.xlu0 %1569
    %1573 = vset.pattern.permute.xlu0 0
    %1574 = vperm.xlu0 %1573, %v1420
    %v1575 = vpop.permute.xlu0 %1574
    %1578 = vset.pattern.permute.xlu0 0
    %1579 = vperm.xlu0 %1578, %v1421
    %v1580 = vpop.permute.xlu0 %1579
    %1583 = vset.pattern.permute.xlu0 0
    %1584 = vperm.xlu0 %1583, %v1422
    %v1585 = vpop.permute.xlu0 %1584
    %1588 = vset.pattern.permute.xlu0 0
    %1589 = vperm.xlu0 %1588, %v1423
    %v1590 = vpop.permute.xlu0 %1589
    %1593 = vset.pattern.permute.xlu0 0
    %1594 = vperm.xlu0 %1593, %v1424
    %v1595 = vpop.permute.xlu0 %1594
    %1598 = vset.pattern.permute.xlu0 0
    %1599 = vperm.xlu0 %1598, %v1425
    %v1600 = vpop.permute.xlu0 %1599
    %1603 = vset.pattern.permute.xlu0 0
    %1604 = vperm.xlu0 %1603, %v1426
    %v1605 = vpop.permute.xlu0 %1604
    %1608 = vset.pattern.permute.xlu0 0
    %1609 = vperm.xlu0 %1608, %v1427
    %v1610 = vpop.permute.xlu0 %1609
    %1613 = vset.pattern.permute.xlu0 0
    %1614 = vperm.xlu0 %1613, %v1428
    %v1615 = vpop.permute.xlu0 %1614
    %1618 = vset.pattern.permute.xlu0 0
    %1619 = vperm.xlu0 %1618, %v1429
    %v1620 = vpop.permute.xlu0 %1619
    %1623 = vset.pattern.permute.xlu0 0
    %1624 = vperm.xlu0 %1623, %v1430
    %v1625 = vpop.permute.xlu0 %1624
    %1628 = vset.pattern.permute.xlu0 0
    %1629 = vperm.xlu0 %1628, %v1431
    %v1630 = vpop.permute.xlu0 %1629
    %1633 = vset.pattern.permute.xlu0 0
    %1634 = vperm.xlu0 %1633, %v1432
    %v1635 = vpop.permute.xlu0 %1634
    %1638 = vset.pattern.permute.xlu0 0
    %1639 = vperm.xlu0 %1638, %v1433
    %v1640 = vpop.permute.xlu0 %1639
    %1643 = vset.pattern.permute.xlu0 0
    %1644 = vperm.xlu0 %1643, %v1434
    %v1645 = vpop.permute.xlu0 %1644
    %1648 = vset.pattern.permute.xlu0 0
    %1649 = vperm.xlu0 %1648, %v1435
    %v1650 = vpop.permute.xlu0 %1649
    %1653 = vset.pattern.permute.xlu0 0
    %1654 = vperm.xlu0 %1653, %v1436
    %v1655 = vpop.permute.xlu0 %1654
    %1658 = vset.pattern.permute.xlu0 0
    %1659 = vperm.xlu0 %1658, %v1437
    %v1660 = vpop.permute.xlu0 %1659
    %1663 = vset.pattern.permute.xlu0 0
    %1664 = vperm.xlu0 %1663, %v1438
    %v1665 = vpop.permute.xlu0 %1664
    %1668 = vset.pattern.permute.xlu0 0
    %1669 = vperm.xlu0 %1668, %v1439
    %v1670 = vpop.permute.xlu0 %1669
    %1673 = vset.pattern.permute.xlu0 0
    %1674 = vperm.xlu0 %1673, %v1440
    %v1675 = vpop.permute.xlu0 %1674
    %1678 = vset.pattern.permute.xlu0 0
    %1679 = vperm.xlu0 %1678, %v1441
    %v1680 = vpop.permute.xlu0 %1679
    %1683 = vset.pattern.permute.xlu0 0
    %1684 = vperm.xlu0 %1683, %v1442
    %v1685 = vpop.permute.xlu0 %1684
    %1688 = vset.pattern.permute.xlu0 0
    %1689 = vperm.xlu0 %1688, %v1443
    %v1690 = vpop.permute.xlu0 %1689
    %1693 = vset.pattern.permute.xlu0 0
    %1694 = vperm.xlu0 %1693, %v1444
    %v1695 = vpop.permute.xlu0 %1694
    %1698 = vset.pattern.permute.xlu0 0
    %1699 = vperm.xlu0 %1698, %v1445
    %v1700 = vpop.permute.xlu0 %1699
    %1703 = vset.pattern.permute.xlu0 0
    %1704 = vperm.xlu0 %1703, %v1446
    %v1705 = vpop.permute.xlu0 %1704
    %1708 = vset.pattern.permute.xlu0 0
    %1709 = vperm.xlu0 %1708, %v1447
    %v1710 = vpop.permute.xlu0 %1709
    %1713 = vset.pattern.permute.xlu0 0
    %1714 = vperm.xlu0 %1713, %v1448
    %v1715 = vpop.permute.xlu0 %1714
    %1718 = vset.pattern.permute.xlu0 0
    %1719 = vperm.xlu0 %1718, %v1449
    %v1720 = vpop.permute.xlu0 %1719
    %1723 = vset.pattern.permute.xlu0 0
    %1724 = vperm.xlu0 %1723, %v1450
    %v1725 = vpop.permute.xlu0 %1724
    %1728 = vset.pattern.permute.xlu0 0
    %1729 = vperm.xlu0 %1728, %v1451
    %v1730 = vpop.permute.xlu0 %1729
    %1733 = vset.pattern.permute.xlu0 0
    %1734 = vperm.xlu0 %1733, %v1452
    %v1735 = vpop.permute.xlu0 %1734
    %1738 = vset.pattern.permute.xlu0 0
    %1739 = vperm.xlu0 %1738, %v1453
    %v1740 = vpop.permute.xlu0 %1739
    %v1742 = vmul.f32 %v425, %v1565
    %v1743 = vmul.f32 %v427, %v1565
    %v1744 = vmul.f32 %v429, %v1570
    %v1745 = vmul.f32 %v431, %v1570
    %v1746 = vmul.f32 %v435, %v1575
    %v1747 = vmul.f32 %v437, %v1575
    %v1748 = vmul.f32 %v439, %v1580
    %v1749 = vmul.f32 %v441, %v1580
    %v1750 = vmul.f32 %v445, %v1585
    %v1751 = vmul.f32 %v447, %v1585
    %v1752 = vmul.f32 %v449, %v1590
    %v1753 = vmul.f32 %v451, %v1590
    %v1754 = vmul.f32 %v455, %v1595
    %v1755 = vmul.f32 %v457, %v1595
    %v1756 = vmul.f32 %v459, %v1600
    %v1757 = vmul.f32 %v461, %v1600
    %v1758 = vmul.f32 %v465, %v1605
    %v1759 = vmul.f32 %v467, %v1605
    %v1760 = vmul.f32 %v469, %v1610
    %v1761 = vmul.f32 %v471, %v1610
    %v1762 = vmul.f32 %v475, %v1615
    %v1763 = vmul.f32 %v477, %v1615
    %v1764 = vmul.f32 %v479, %v1620
    %v1765 = vmul.f32 %v481, %v1620
    %v1766 = vmul.f32 %v485, %v1625
    %v1767 = vmul.f32 %v487, %v1625
    %v1768 = vmul.f32 %v489, %v1630
    %v1769 = vmul.f32 %v491, %v1630
    %v1770 = vmul.f32 %v495, %v1635
    %v1771 = vmul.f32 %v497, %v1635
    %v1772 = vmul.f32 %v499, %v1640
    %v1773 = vmul.f32 %v501, %v1640
    %v1774 = vmul.f32 %v505, %v1645
    %v1775 = vmul.f32 %v507, %v1645
    %v1776 = vmul.f32 %v509, %v1650
    %v1777 = vmul.f32 %v511, %v1650
    %v1778 = vmul.f32 %v515, %v1655
    %v1779 = vmul.f32 %v517, %v1655
    %v1780 = vmul.f32 %v519, %v1660
    %v1781 = vmul.f32 %v521, %v1660
    %v1782 = vmul.f32 %v525, %v1665
    %v1783 = vmul.f32 %v527, %v1665
    %v1784 = vmul.f32 %v529, %v1670
    %v1785 = vmul.f32 %v531, %v1670
    %v1786 = vmul.f32 %v535, %v1675
    %v1787 = vmul.f32 %v537, %v1675
    %v1788 = vmul.f32 %v539, %v1680
    %v1789 = vmul.f32 %v541, %v1680
    %v1790 = vmul.f32 %v545, %v1685
    %v1791 = vmul.f32 %v547, %v1685
    %v1792 = vmul.f32 %v549, %v1690
    %v1793 = vmul.f32 %v551, %v1690
    %v1794 = vmul.f32 %v555, %v1695
    %v1795 = vmul.f32 %v557, %v1695
    %v1796 = vmul.f32 %v559, %v1700
    %v1797 = vmul.f32 %v561, %v1700
    %v1798 = vmul.f32 %v565, %v1705
    %v1799 = vmul.f32 %v567, %v1705
    %v1800 = vmul.f32 %v569, %v1710
    %v1801 = vmul.f32 %v571, %v1710
    %v1802 = vmul.f32 %v575, %v1715
    %v1803 = vmul.f32 %v577, %v1715
    %v1804 = vmul.f32 %v579, %v1720
    %v1805 = vmul.f32 %v581, %v1720
    %v1806 = vmul.f32 %v585, %v1725
    %v1807 = vmul.f32 %v587, %v1725
    %v1808 = vmul.f32 %v589, %v1730
    %v1809 = vmul.f32 %v591, %v1730
    %v1810 = vmul.f32 %v595, %v1735
    %v1811 = vmul.f32 %v597, %v1735
    %v1812 = vmul.f32 %v599, %v1740
    %v1813 = vmul.f32 %v601, %v1740
    %1815 = vset.pattern.permute.xlu0 0
    %1816 = vperm.xlu0 %1815, %v1526
    %v1817 = vpop.permute.xlu0 %1816
    %1820 = vset.pattern.permute.xlu0 0
    %1821 = vperm.xlu0 %1820, %v1527
    %v1822 = vpop.permute.xlu0 %1821
    %1825 = vset.pattern.permute.xlu0 0
    %1826 = vperm.xlu0 %1825, %v1528
    %v1827 = vpop.permute.xlu0 %1826
    %1830 = vset.pattern.permute.xlu0 0
    %1831 = vperm.xlu0 %1830, %v1529
    %v1832 = vpop.permute.xlu0 %1831
    %1835 = vset.pattern.permute.xlu0 0
    %1836 = vperm.xlu0 %1835, %v1530
    %v1837 = vpop.permute.xlu0 %1836
    %1840 = vset.pattern.permute.xlu0 0
    %1841 = vperm.xlu0 %1840, %v1531
    %v1842 = vpop.permute.xlu0 %1841
    %1845 = vset.pattern.permute.xlu0 0
    %1846 = vperm.xlu0 %1845, %v1532
    %v1847 = vpop.permute.xlu0 %1846
    %1850 = vset.pattern.permute.xlu0 0
    %1851 = vperm.xlu0 %1850, %v1533
    %v1852 = vpop.permute.xlu0 %1851
    %1855 = vset.pattern.permute.xlu0 0
    %1856 = vperm.xlu0 %1855, %v1534
    %v1857 = vpop.permute.xlu0 %1856
    %1860 = vset.pattern.permute.xlu0 0
    %1861 = vperm.xlu0 %1860, %v1535
    %v1862 = vpop.permute.xlu0 %1861
    %1865 = vset.pattern.permute.xlu0 0
    %1866 = vperm.xlu0 %1865, %v1536
    %v1867 = vpop.permute.xlu0 %1866
    %1870 = vset.pattern.permute.xlu0 0
    %1871 = vperm.xlu0 %1870, %v1537
    %v1872 = vpop.permute.xlu0 %1871
    %1875 = vset.pattern.permute.xlu0 0
    %1876 = vperm.xlu0 %1875, %v1538
    %v1877 = vpop.permute.xlu0 %1876
    %1880 = vset.pattern.permute.xlu0 0
    %1881 = vperm.xlu0 %1880, %v1539
    %v1882 = vpop.permute.xlu0 %1881
    %1885 = vset.pattern.permute.xlu0 0
    %1886 = vperm.xlu0 %1885, %v1540
    %v1887 = vpop.permute.xlu0 %1886
    %1890 = vset.pattern.permute.xlu0 0
    %1891 = vperm.xlu0 %1890, %v1541
    %v1892 = vpop.permute.xlu0 %1891
    %1895 = vset.pattern.permute.xlu0 0
    %1896 = vperm.xlu0 %1895, %v1542
    %v1897 = vpop.permute.xlu0 %1896
    %1900 = vset.pattern.permute.xlu0 0
    %1901 = vperm.xlu0 %1900, %v1543
    %v1902 = vpop.permute.xlu0 %1901
    %1905 = vset.pattern.permute.xlu0 0
    %1906 = vperm.xlu0 %1905, %v1544
    %v1907 = vpop.permute.xlu0 %1906
    %1910 = vset.pattern.permute.xlu0 0
    %1911 = vperm.xlu0 %1910, %v1545
    %v1912 = vpop.permute.xlu0 %1911
    %1915 = vset.pattern.permute.xlu0 0
    %1916 = vperm.xlu0 %1915, %v1546
    %v1917 = vpop.permute.xlu0 %1916
    %1920 = vset.pattern.permute.xlu0 0
    %1921 = vperm.xlu0 %1920, %v1547
    %v1922 = vpop.permute.xlu0 %1921
    %1925 = vset.pattern.permute.xlu0 0
    %1926 = vperm.xlu0 %1925, %v1548
    %v1927 = vpop.permute.xlu0 %1926
    %1930 = vset.pattern.permute.xlu0 0
    %1931 = vperm.xlu0 %1930, %v1549
    %v1932 = vpop.permute.xlu0 %1931
    %1935 = vset.pattern.permute.xlu0 0
    %1936 = vperm.xlu0 %1935, %v1550
    %v1937 = vpop.permute.xlu0 %1936
    %1940 = vset.pattern.permute.xlu0 0
    %1941 = vperm.xlu0 %1940, %v1551
    %v1942 = vpop.permute.xlu0 %1941
    %1945 = vset.pattern.permute.xlu0 0
    %1946 = vperm.xlu0 %1945, %v1552
    %v1947 = vpop.permute.xlu0 %1946
    %1950 = vset.pattern.permute.xlu0 0
    %1951 = vperm.xlu0 %1950, %v1553
    %v1952 = vpop.permute.xlu0 %1951
    %1955 = vset.pattern.permute.xlu0 0
    %1956 = vperm.xlu0 %1955, %v1554
    %v1957 = vpop.permute.xlu0 %1956
    %1960 = vset.pattern.permute.xlu0 0
    %1961 = vperm.xlu0 %1960, %v1555
    %v1962 = vpop.permute.xlu0 %1961
    %1965 = vset.pattern.permute.xlu0 0
    %1966 = vperm.xlu0 %1965, %v1556
    %v1967 = vpop.permute.xlu0 %1966
    %1970 = vset.pattern.permute.xlu0 0
    %1971 = vperm.xlu0 %1970, %v1557
    %v1972 = vpop.permute.xlu0 %1971
    %1975 = vset.pattern.permute.xlu0 0
    %1976 = vperm.xlu0 %1975, %v1558
    %v1977 = vpop.permute.xlu0 %1976
    %1980 = vset.pattern.permute.xlu0 0
    %1981 = vperm.xlu0 %1980, %v1559
    %v1982 = vpop.permute.xlu0 %1981
    %1985 = vset.pattern.permute.xlu0 0
    %1986 = vperm.xlu0 %1985, %v1560
    %v1987 = vpop.permute.xlu0 %1986
    %1990 = vset.pattern.permute.xlu0 0
    %1991 = vperm.xlu0 %1990, %v1561
    %v1992 = vpop.permute.xlu0 %1991
    %v1994 = vadd.f32 %v1742, %v1817
    %v1995 = vadd.f32 %v1743, %v1817
    %v1996 = vadd.f32 %v1744, %v1822
    %v1997 = vadd.f32 %v1745, %v1822
    %v1998 = vadd.f32 %v1746, %v1827
    %v1999 = vadd.f32 %v1747, %v1827
    %v2000 = vadd.f32 %v1748, %v1832
    %v2001 = vadd.f32 %v1749, %v1832
    %v2002 = vadd.f32 %v1750, %v1837
    %v2003 = vadd.f32 %v1751, %v1837
    %v2004 = vadd.f32 %v1752, %v1842
    %v2005 = vadd.f32 %v1753, %v1842
    %v2006 = vadd.f32 %v1754, %v1847
    %v2007 = vadd.f32 %v1755, %v1847
    %v2008 = vadd.f32 %v1756, %v1852
    %v2009 = vadd.f32 %v1757, %v1852
    %v2010 = vadd.f32 %v1758, %v1857
    %v2011 = vadd.f32 %v1759, %v1857
    %v2012 = vadd.f32 %v1760, %v1862
    %v2013 = vadd.f32 %v1761, %v1862
    %v2014 = vadd.f32 %v1762, %v1867
    %v2015 = vadd.f32 %v1763, %v1867
    %v2016 = vadd.f32 %v1764, %v1872
    %v2017 = vadd.f32 %v1765, %v1872
    %v2018 = vadd.f32 %v1766, %v1877
    %v2019 = vadd.f32 %v1767, %v1877
    %v2020 = vadd.f32 %v1768, %v1882
    %v2021 = vadd.f32 %v1769, %v1882
    %v2022 = vadd.f32 %v1770, %v1887
    %v2023 = vadd.f32 %v1771, %v1887
    %v2024 = vadd.f32 %v1772, %v1892
    %v2025 = vadd.f32 %v1773, %v1892
    %v2026 = vadd.f32 %v1774, %v1897
    %v2027 = vadd.f32 %v1775, %v1897
    %v2028 = vadd.f32 %v1776, %v1902
    %v2029 = vadd.f32 %v1777, %v1902
    %v2030 = vadd.f32 %v1778, %v1907
    %v2031 = vadd.f32 %v1779, %v1907
    %v2032 = vadd.f32 %v1780, %v1912
    %v2033 = vadd.f32 %v1781, %v1912
    %v2034 = vadd.f32 %v1782, %v1917
    %v2035 = vadd.f32 %v1783, %v1917
    %v2036 = vadd.f32 %v1784, %v1922
    %v2037 = vadd.f32 %v1785, %v1922
    %v2038 = vadd.f32 %v1786, %v1927
    %v2039 = vadd.f32 %v1787, %v1927
    %v2040 = vadd.f32 %v1788, %v1932
    %v2041 = vadd.f32 %v1789, %v1932
    %v2042 = vadd.f32 %v1790, %v1937
    %v2043 = vadd.f32 %v1791, %v1937
    %v2044 = vadd.f32 %v1792, %v1942
    %v2045 = vadd.f32 %v1793, %v1942
    %v2046 = vadd.f32 %v1794, %v1947
    %v2047 = vadd.f32 %v1795, %v1947
    %v2048 = vadd.f32 %v1796, %v1952
    %v2049 = vadd.f32 %v1797, %v1952
    %v2050 = vadd.f32 %v1798, %v1957
    %v2051 = vadd.f32 %v1799, %v1957
    %v2052 = vadd.f32 %v1800, %v1962
    %v2053 = vadd.f32 %v1801, %v1962
    %v2054 = vadd.f32 %v1802, %v1967
    %v2055 = vadd.f32 %v1803, %v1967
    %v2056 = vadd.f32 %v1804, %v1972
    %v2057 = vadd.f32 %v1805, %v1972
    %v2058 = vadd.f32 %v1806, %v1977
    %v2059 = vadd.f32 %v1807, %v1977
    %v2060 = vadd.f32 %v1808, %v1982
    %v2061 = vadd.f32 %v1809, %v1982
    %v2062 = vadd.f32 %v1810, %v1987
    %v2063 = vadd.f32 %v1811, %v1987
    %v2064 = vadd.f32 %v1812, %v1992
    %v2065 = vadd.f32 %v1813, %v1992
    %2066 = vst [vmem:[#allocation2] sm:$0xff] %v1994
    %2067 = vst.msk [vmem:[#allocation2 + $0x8] sm:$0xff] %vm52, %v1995
    %2068 = vst [vmem:[#allocation2 + $0x10] sm:$0xff] %v1996
    %2069 = vst.msk [vmem:[#allocation2 + $0x18] sm:$0xff] %vm52, %v1997
    %2070 = vst [vmem:[#allocation2 + $0x20] sm:$0xff] %v1998
    %2071 = vst.msk [vmem:[#allocation2 + $0x28] sm:$0xff] %vm52, %v1999
    %2072 = vst [vmem:[#allocation2 + $0x30] sm:$0xff] %v2000
    %2073 = vst.msk [vmem:[#allocation2 + $0x38] sm:$0xff] %vm52, %v2001
    %2074 = vst [vmem:[#allocation2 + $0x40] sm:$0xff] %v2002
    %2075 = vst.msk [vmem:[#allocation2 + $0x48] sm:$0xff] %vm52, %v2003
    %2076 = vst [vmem:[#allocation2 + $0x50] sm:$0xff] %v2004
    %2077 = vst.msk [vmem:[#allocation2 + $0x58] sm:$0xff] %vm52, %v2005
    %2078 = vst [vmem:[#allocation2 + $0x60] sm:$0xff] %v2006
    %2079 = vst.msk [vmem:[#allocation2 + $0x68] sm:$0xff] %vm52, %v2007
    %2080 = vst [vmem:[#allocation2 + $0x70] sm:$0xff] %v2008
    %2081 = vst.msk [vmem:[#allocation2 + $0x78] sm:$0xff] %vm52, %v2009
    %2082 = vst [vmem:[#allocation2 + $0x80] sm:$0xff] %v2010
    %2083 = vst.msk [vmem:[#allocation2 + $0x88] sm:$0xff] %vm52, %v2011
    %2084 = vst [vmem:[#allocation2 + $0x90] sm:$0xff] %v2012
    %2085 = vst.msk [vmem:[#allocation2 + $0x98] sm:$0xff] %vm52, %v2013
    %2086 = vst [vmem:[#allocation2 + $0xa0] sm:$0xff] %v2014
    %2087 = vst.msk [vmem:[#allocation2 + $0xa8] sm:$0xff] %vm52, %v2015
    %2088 = vst [vmem:[#allocation2 + $0xb0] sm:$0xff] %v2016
    %2089 = vst.msk [vmem:[#allocation2 + $0xb8] sm:$0xff] %vm52, %v2017
    %2090 = vst [vmem:[#allocation2 + $0xc0] sm:$0xff] %v2018
    %2091 = vst.msk [vmem:[#allocation2 + $0xc8] sm:$0xff] %vm52, %v2019
    %2092 = vst [vmem:[#allocation2 + $0xd0] sm:$0xff] %v2020
    %2093 = vst.msk [vmem:[#allocation2 + $0xd8] sm:$0xff] %vm52, %v2021
    %2094 = vst [vmem:[#allocation2 + $0xe0] sm:$0xff] %v2022
    %2095 = vst.msk [vmem:[#allocation2 + $0xe8] sm:$0xff] %vm52, %v2023
    %2096 = vst [vmem:[#allocation2 + $0xf0] sm:$0xff] %v2024
    %2097 = vst.msk [vmem:[#allocation2 + $0xf8] sm:$0xff] %vm52, %v2025
    %2098 = vst [vmem:[#allocation2 + $0x100] sm:$0xff] %v2026
    %2099 = vst.msk [vmem:[#allocation2 + $0x108] sm:$0xff] %vm52, %v2027
    %2100 = vst [vmem:[#allocation2 + $0x110] sm:$0xff] %v2028
    %2101 = vst.msk [vmem:[#allocation2 + $0x118] sm:$0xff] %vm52, %v2029
    %2102 = vst [vmem:[#allocation2 + $0x120] sm:$0xff] %v2030
    %2103 = vst.msk [vmem:[#allocation2 + $0x128] sm:$0xff] %vm52, %v2031
    %2104 = vst [vmem:[#allocation2 + $0x130] sm:$0xff] %v2032
    %2105 = vst.msk [vmem:[#allocation2 + $0x138] sm:$0xff] %vm52, %v2033
    %2106 = vst [vmem:[#allocation2 + $0x140] sm:$0xff] %v2034
    %2107 = vst.msk [vmem:[#allocation2 + $0x148] sm:$0xff] %vm52, %v2035
    %2108 = vst [vmem:[#allocation2 + $0x150] sm:$0xff] %v2036
    %2109 = vst.msk [vmem:[#allocation2 + $0x158] sm:$0xff] %vm52, %v2037
    %2110 = vst [vmem:[#allocation2 + $0x160] sm:$0xff] %v2038
    %2111 = vst.msk [vmem:[#allocation2 + $0x168] sm:$0xff] %vm52, %v2039
    %2112 = vst [vmem:[#allocation2 + $0x170] sm:$0xff] %v2040
    %2113 = vst.msk [vmem:[#allocation2 + $0x178] sm:$0xff] %vm52, %v2041
    %2114 = vst [vmem:[#allocation2 + $0x180] sm:$0xff] %v2042
    %2115 = vst.msk [vmem:[#allocation2 + $0x188] sm:$0xff] %vm52, %v2043
    %2116 = vst [vmem:[#allocation2 + $0x190] sm:$0xff] %v2044
    %2117 = vst.msk [vmem:[#allocation2 + $0x198] sm:$0xff] %vm52, %v2045
    %2118 = vst [vmem:[#allocation2 + $0x1a0] sm:$0xff] %v2046
    %2119 = vst.msk [vmem:[#allocation2 + $0x1a8] sm:$0xff] %vm52, %v2047
    %2120 = vst [vmem:[#allocation2 + $0x1b0] sm:$0xff] %v2048
    %2121 = vst.msk [vmem:[#allocation2 + $0x1b8] sm:$0xff] %vm52, %v2049
    %2122 = vst [vmem:[#allocation2 + $0x1c0] sm:$0xff] %v2050
    %2123 = vst.msk [vmem:[#allocation2 + $0x1c8] sm:$0xff] %vm52, %v2051
    %2124 = vst [vmem:[#allocation2 + $0x1d0] sm:$0xff] %v2052
    %2125 = vst.msk [vmem:[#allocation2 + $0x1d8] sm:$0xff] %vm52, %v2053
    %2126 = vst [vmem:[#allocation2 + $0x1e0] sm:$0xff] %v2054
    %2127 = vst.msk [vmem:[#allocation2 + $0x1e8] sm:$0xff] %vm52, %v2055
    %2128 = vst [vmem:[#allocation2 + $0x1f0] sm:$0xff] %v2056
    %2129 = vst.msk [vmem:[#allocation2 + $0x1f8] sm:$0xff] %vm52, %v2057
    %2130 = vst [vmem:[#allocation2 + $0x200] sm:$0xff] %v2058
    %2131 = vst.msk [vmem:[#allocation2 + $0x208] sm:$0xff] %vm52, %v2059
    %2132 = vst [vmem:[#allocation2 + $0x210] sm:$0xff] %v2060
    %2133 = vst.msk [vmem:[#allocation2 + $0x218] sm:$0xff] %vm52, %v2061
    %2134 = vst [vmem:[#allocation2 + $0x220] sm:$0xff] %v2062
    %2135 = vst.msk [vmem:[#allocation2 + $0x228] sm:$0xff] %vm52, %v2063
    %2136 = vst [vmem:[#allocation2 + $0x230] sm:$0xff] %v2064
    %2137 = vst.msk [vmem:[#allocation2 + $0x238] sm:$0xff] %vm52, %v2065
    // Predicated region
    $region30: #{tpu_custom_call.1} parent=1 // pred_check
      _
    $region31: #{tpu_custom_call.1} parent=1 // pred_check_branch
      %2139 = sbr.rel (0) target = $region33
    $region32: #{tpu_custom_call.1} parent=1 // pred_region
      %s2141 = ssub.s32 9216, 9216
      %2142 = vsyncadd [#allocation3], %s2141
      %s2143 = sshll.u32 [#allocation2], 4
      %s2144 = int_to_ptr.vmem [resolvable:$true] %s2143
      %2149 = dma.vmem_to_hbm [thread:$0]  %s2144, 9216, %s7, [#allocation3], 256, 256, 16
    $region33: #{tpu_custom_call.1} parent=1 // pred_fallthru
      _
    // Predicated region
    $region34: #{tpu_custom_call.1} parent=1 // pred_check
      _
    $region35: #{tpu_custom_call.1} parent=1 // pred_check_branch
      %2151 = sbr.rel (0) target = $region37
    $region36: #{tpu_custom_call.1} parent=1 // pred_region
      %2152 = dma.done [#allocation3], 9216
    $region37: #{tpu_custom_call.1} parent=1 // pred_fallthru
      _
    %2153 = vsyncpa [#allocation3], 1

</llo_original>
